<compile_context>
chip_gen: v7x
topology: tpu7x:2x2x1
jax: 0.10.0
libtpu: 0.0.40
codegen_flags: <defaults>
</compile_context>

<pallas_src>
import functools

import numpy as np

import jax
import jax.numpy as jnp
from jax import lax
from jax.experimental import pallas as pl
from jax.experimental.pallas import tpu as pltpu

IGNORE_LABEL = 255
AUX_WEIGHT = (1.0, 0.4, 0.4, 0.4)
OHEM_THRESH = 0.7
OHEM_MIN_KEPT = 100000
DEFAULT_TILE_P = 16384


def _round_up(x, m):
    return (x + m - 1) // m * m


def _pick_tile_p(P, C, n_heads, tile_p):
    """Largest 128-multiple pixel tile that covers P (if small) and keeps the
    double-buffered per-step working set under ~12 MiB (v5e default scoped
    VMEM is 16 MiB; v6e/v7x allow more)."""
    tile_p = min(tile_p, _round_up(P, 128))
    bytes_per_pixel = 4 * (n_heads * C + 2)           # head blocks + target + loss out
    max_tile = (12 * 1024 * 1024) // (2 * bytes_per_pixel)
    max_tile = max(128, (max_tile // 128) * 128)
    return max(128, min(tile_p, max_tile))


# ---------------------------------------------------------------------------
# Fused kernel: per-pixel OHEM-head CE + per-batch scalar stats for all heads
# ---------------------------------------------------------------------------
def _fused_ce_kernel(*refs, n_aux, ignore_label, thresh, n_pixels, tile_p,
                     use_tail_mask):
    """refs = [main, aux_0..aux_{n_aux-1}, target,
               loss_out, vcnt, msum, gcnt, gsum, asum_0..asum_{n_aux-1}]

    Logits blocks are (1, C, TILE_P): classes on sublanes, pixels on lanes.
    """
    n_heads = 1 + n_aux
    head_refs = refs[:n_heads]
    tgt_ref = refs[n_heads]
    loss_ref = refs[n_heads + 1]
    vcnt_ref, msum_ref, gcnt_ref, gsum_ref = refs[n_heads + 2:n_heads + 6]
    asum_refs = refs[n_heads + 6:n_heads + 6 + n_aux]

    # per-batch accumulators: init at the first pixel tile of each batch image
    @pl.when(pl.program_id(1) == 0)
    def _():
        for r in (vcnt_ref, msum_ref, gcnt_ref, gsum_ref, *asum_refs):
            r[...] = jnp.zeros_like(r)

    tgt = tgt_ref[0]                                          # (1, TILE_P) int32
    valid = tgt != ignore_label
    if use_tail_mask:                                         # only when P % tile_p != 0
        pix = (pl.program_id(1) * tile_p
               + lax.broadcasted_iota(jnp.int32, tgt.shape, 1))
        valid = valid & (pix < n_pixels)
    valid_f = valid.astype(jnp.float32)

    def ce(logits):                                           # (C, TILE_P) -> (1, TILE_P)
        logits = logits.astype(jnp.float32)
        m = jnp.max(logits, axis=0, keepdims=True)
        lse = m + jnp.log(jnp.sum(jnp.exp(logits - m), axis=0, keepdims=True))
        cls = lax.broadcasted_iota(jnp.int32, logits.shape, 0)
        logit_t = jnp.sum(jnp.where(cls == tgt, logits, 0.0),
                          axis=0, keepdims=True)
        return lse - logit_t

    # ---- main (OHEM) head: per-pixel loss with -1.0 sentinel + scalar stats
    main_loss = ce(head_refs[0][0])
    loss_ref[0] = jnp.where(valid, main_loss, jnp.float32(-1.0))

    gt = valid & (main_loss > thresh)
    vcnt_ref[0] += jnp.sum(valid_f, keepdims=True)
    msum_ref[0] += jnp.sum(jnp.where(valid, main_loss, 0.0), keepdims=True)
    gcnt_ref[0] += jnp.sum(gt.astype(jnp.float32), keepdims=True)
    gsum_ref[0] += jnp.sum(jnp.where(gt, main_loss, 0.0), keepdims=True)

    # ---- aux heads: only the masked sum is needed (mean CE = sum / valid_cnt)
    for i in range(n_aux):
        aux_loss = ce(head_refs[1 + i][0])
        asum_refs[i][0] += jnp.sum(jnp.where(valid, aux_loss, 0.0), keepdims=True)


def fused_heads_ce(head_logits, target, *, ignore_label=IGNORE_LABEL,
                   thresh=OHEM_THRESH, tile_p=DEFAULT_TILE_P):
    """Single pallas_call over all heads (head 0 = main OHEM head).

    head_logits: list of (B, C, H, W) float logits (NCHW, native layout; viewed
                 as (B, C, P) with no transpose/pad).
    target:      (B, H, W) int labels with `ignore_label` entries.

    Returns (loss_px, vcnt, msum, gcnt, gsum, aux_sums):
      loss_px  : flat (B*H*W,) main-head per-pixel CE, -1.0 at ignored pixels
      vcnt     : number of valid pixels
      msum     : sum of valid main-head losses
      gcnt/gsum: count / sum of valid main losses strictly above `thresh`
      aux_sums : list of per-aux-head sums of valid losses
    """
    n_heads = len(head_logits)
    n_aux = n_heads - 1
    B, C, H, W = head_logits[0].shape
    P = H * W

    views = [x.reshape(B, C, P) for x in head_logits]
    tgt = target.reshape(B, 1, P).astype(jnp.int32)

    tile_p = _pick_tile_p(P, C, n_heads, tile_p)
    grid = (B, pl.cdiv(P, tile_p))

    px_spec = pl.BlockSpec((1, C, tile_p), lambda b, p: (b, 0, p))
    tgt_spec = pl.BlockSpec((1, 1, tile_p), lambda b, p: (b, 0, p))
    loss_spec = pl.BlockSpec((1, 1, tile_p), lambda b, p: (b, 0, p))
    acc_spec = pl.BlockSpec((1, 1, 1), lambda b, p: (b, 0, 0))

    n_scalar_outs = 4 + n_aux
    out_shape = ((jax.ShapeDtypeStruct((B, 1, P), jnp.float32),)
                 + (jax.ShapeDtypeStruct((B, 1, 1), jnp.float32),) * n_scalar_outs)

    outs = pl.pallas_call(
        functools.partial(_fused_ce_kernel, n_aux=n_aux,
                          ignore_label=ignore_label, thresh=thresh,
                          n_pixels=P, tile_p=tile_p,
                          use_tail_mask=(P % tile_p != 0)),
        out_shape=out_shape,
        grid_spec=pltpu.PrefetchScalarGridSpec(
            num_scalar_prefetch=0,
            grid=grid,
            in_specs=[px_spec] * n_heads + [tgt_spec],
            out_specs=[loss_spec] + [acc_spec] * n_scalar_outs),
        compiler_params=pltpu.CompilerParams(
            dimension_semantics=("parallel", "arbitrary")),
    )(*views, tgt)

    loss_px = outs[0].reshape(B * P)
    vcnt = jnp.sum(outs[1])
    msum = jnp.sum(outs[2])
    gcnt = jnp.sum(outs[3])
    gsum = jnp.sum(outs[4])
    aux_sums = [jnp.sum(outs[5 + i]) for i in range(n_aux)]
    return loss_px, vcnt, msum, gcnt, gsum, aux_sums


# ---------------------------------------------------------------------------
# OHEM selection from per-pixel losses + in-kernel stats (no sort / no top_k)
# ---------------------------------------------------------------------------
def _ohem_from_pixel_losses(loss_px, vcnt, msum, gcnt, gsum, *, thresh, min_kept):
    mean_valid = msum / jnp.maximum(vcnt, 1.0)
    mean_gt = gsum / jnp.maximum(gcnt, 1.0)

    # Exact kth-largest (= loss_sorted[min_kept]) via bisection on the float32
    # bit pattern: valid losses are >= 0 so their bits are monotone non-negative
    # int32; ignored pixels carry -1.0 (negative bits) and never count.
    bits = lax.bitcast_convert_type(loss_px, jnp.int32)
    k = jnp.int32(min_kept + 1)
    hi0 = jnp.maximum(jnp.max(bits), 0)

    def body(_, carry):
        lo, hi = carry
        mid = lo + (hi - lo + 1) // 2
        cnt = jnp.sum((bits >= mid).astype(jnp.int32))
        take = cnt >= k
        return jnp.where(take, mid, lo), jnp.where(take, hi, mid - 1)

    lo, _ = lax.fori_loop(0, 32, body, (jnp.int32(0), hi0))
    kth = lax.bitcast_convert_type(lo, jnp.float32)

    # mean of the top-min_kept values: all values strictly above `kth` plus the
    # tie-filling copies of `kth` itself (exact, since ties all equal kth).
    gtk = loss_px > kth
    c_gtk = jnp.sum(gtk.astype(jnp.float32))
    s_gtk = jnp.sum(jnp.where(gtk, loss_px, 0.0))
    mean_topk = (s_gtk + (jnp.float32(min_kept) - c_gtk) * kth) / jnp.float32(min_kept)

    out = jnp.where(vcnt < jnp.float32(min_kept), mean_valid,
                    jnp.where(kth > thresh, mean_gt, mean_topk))
    return jnp.where(vcnt == 0, jnp.float32(0.0), out)


def bisenetv2_loss(main_out, aux_outs, target, *, aux_weight=AUX_WEIGHT,
                   ignore_label=IGNORE_LABEL, thresh=OHEM_THRESH,
                   min_kept=OHEM_MIN_KEPT, tile_p=DEFAULT_TILE_P):
    """Training-mode BiSeNetV2Loss: total = w0*OHEM(main) + sum_i w_{i+1}*CE(aux_i).

    main_out / aux_outs[i]: (B, C, H, W) float logits (NCHW, same size as target)
    target:                 (B, H, W) int labels with ignore_label entries
    """
    # TODO(synk): bilinear resize of score maps to the target resolution
    # (align_corners=True) and the instance-mask / dict target formats of
    # _process_target are not implemented; heads must match target resolution.
    heads = [main_out] + list(aux_outs)
    loss_px, vcnt, msum, gcnt, gsum, aux_sums = fused_heads_ce(
        heads, target, ignore_label=ignore_label, thresh=thresh, tile_p=tile_p)

    main_loss = _ohem_from_pixel_losses(loss_px, vcnt, msum, gcnt, gsum,
                                        thresh=thresh, min_kept=min_kept)

    total = jnp.float32(aux_weight[0]) * main_loss
    denom = jnp.maximum(vcnt, 1.0)
    for i, s in enumerate(aux_sums):
        total = total + jnp.float32(aux_weight[i + 1]) * (s / denom)
    return total


# ---------------------------------------------------------------------------
# Pure-NumPy reference (float64), mirroring the PyTorch module
# ---------------------------------------------------------------------------
def _reference_loss(main_out, aux_outs, target, *, aux_weight, ignore_label,
                    thresh, min_kept):
    def per_pixel(logits, tgt):
        logits = np.asarray(logits, np.float64)
        B, C = logits.shape[:2]
        lg = logits.reshape(B, C, -1)
        t = np.asarray(tgt).reshape(B, -1)
        m = lg.max(axis=1, keepdims=True)
        lse = (m + np.log(np.exp(lg - m).sum(axis=1, keepdims=True)))[:, 0, :]
        tc = np.clip(t, 0, C - 1)
        lt = np.take_along_axis(lg, tc[:, None, :], axis=1)[:, 0, :]
        return (lse - lt).reshape(-1), (t != ignore_label).reshape(-1)

    loss, valid = per_pixel(main_out, target)
    lv = loss[valid]
    if lv.size == 0:
        main = 0.0
    elif lv.size < min_kept:
        main = float(lv.mean())
    else:
        ls = np.sort(lv)[::-1]
        if ls[min_kept] > thresh:
            main = float(lv[lv > thresh].mean())
        else:
            main = float(ls[:min_kept].mean())

    total = aux_weight[0] * main
    for i, aux in enumerate(aux_outs):
        al, av = per_pixel(aux, target)
        total += aux_weight[i + 1] * float(al[av].mean())
    return float(total)


if __name__ == "__main__":
    # small deterministic example: B=2, C=8 classes, H=W=16
    B, C, H, W = 2, 8, 16, 16
    key = jax.random.PRNGKey(0)
    k_main, k_a1, k_a2, k_a3, k_tgt = jax.random.split(key, 5)

    main_out = jax.random.normal(k_main, (B, C, H, W), dtype=jnp.float32)
    aux_outs = [
        jax.random.normal(k_a1, (B, C, H, W), dtype=jnp.float32),
        jax.random.normal(k_a2, (B, C, H, W), dtype=jnp.float32),
        jax.random.normal(k_a3, (B, C, H, W), dtype=jnp.float32),
    ]
    target = jax.random.randint(k_tgt, (B, H, W), 0, C, dtype=jnp.int32)
    target = target.at[:, :4, :4].set(IGNORE_LABEL)   # ignored corner region

    loss_fn = jax.jit(bisenetv2_loss,
                      static_argnames=("aux_weight", "ignore_label", "thresh",
                                       "min_kept", "tile_p"))

    # exercise all three OHEM branches:
    #   num_valid < min_kept | loss_sorted[k] > thresh | top-min_kept mean
    cases = [
        dict(min_kept=OHEM_MIN_KEPT, thresh=OHEM_THRESH),
        dict(min_kept=50, thresh=0.7),
        dict(min_kept=50, thresh=10.0),
    ]

    ok = True
    for cfg in cases:
        got = jax.block_until_ready(loss_fn(main_out, aux_outs, target, **cfg))
        want = _reference_loss(np.asarray(main_out),
                               [np.asarray(a) for a in aux_outs],
                               np.asarray(target),
                               aux_weight=AUX_WEIGHT,
                               ignore_label=IGNORE_LABEL, **cfg)
        ok &= bool(np.isfinite(float(got)))
        ok &= bool(np.isclose(float(got), want, rtol=1e-4, atol=1e-5))

    if not ok:
        raise SystemExit("mismatch vs reference")
    print("KERNEL_OK")
</pallas_src>

<mosaic_0001>
module attributes {stable_mosaic.version = 11 : i64} {
  func.func @_fused_ce_kernel(%arg0: i32, %arg1: i32, %arg2: memref<1x8x256xf32, #tpu.memory_space<vmem>>, %arg3: memref<1x8x256xf32, #tpu.memory_space<vmem>>, %arg4: memref<1x8x256xf32, #tpu.memory_space<vmem>>, %arg5: memref<1x8x256xf32, #tpu.memory_space<vmem>>, %arg6: memref<1x1x256xi32, #tpu.memory_space<vmem>>, %arg7: memref<1x1x256xf32, #tpu.memory_space<vmem>>, %arg8: memref<1x1x1xf32, #tpu.memory_space<vmem>>, %arg9: memref<1x1x1xf32, #tpu.memory_space<vmem>>, %arg10: memref<1x1x1xf32, #tpu.memory_space<vmem>>, %arg11: memref<1x1x1xf32, #tpu.memory_space<vmem>>, %arg12: memref<1x1x1xf32, #tpu.memory_space<vmem>>, %arg13: memref<1x1x1xf32, #tpu.memory_space<vmem>>, %arg14: memref<1x1x1xf32, #tpu.memory_space<vmem>>) attributes {dimension_semantics = [#tpu.dimension_semantics<parallel>, #tpu.dimension_semantics<arbitrary>], iteration_bounds = array<i64: 2, 1>, scalar_prefetch = 0 : i64, scratch_operands = 0 : i64, tpu.core_type = #tpu.core_type<tc>, window_params = [{transform_indices = @transform_0, window_bounds = array<i64: 1, 8, 256>}, {transform_indices = @transform_1, window_bounds = array<i64: 1, 8, 256>}, {transform_indices = @transform_2, window_bounds = array<i64: 1, 8, 256>}, {transform_indices = @transform_3, window_bounds = array<i64: 1, 8, 256>}, {transform_indices = @transform_4, window_bounds = array<i64: 1, 1, 256>}, {transform_indices = @transform_5, window_bounds = array<i64: 1, 1, 256>}, {transform_indices = @transform_6, window_bounds = array<i64: 1, 1, 1>}, {transform_indices = @transform_7, window_bounds = array<i64: 1, 1, 1>}, {transform_indices = @transform_8, window_bounds = array<i64: 1, 1, 1>}, {transform_indices = @transform_9, window_bounds = array<i64: 1, 1, 1>}, {transform_indices = @transform_10, window_bounds = array<i64: 1, 1, 1>}, {transform_indices = @transform_11, window_bounds = array<i64: 1, 1, 1>}, {transform_indices = @transform_12, window_bounds = array<i64: 1, 1, 1>}]} {
    %c0_i32 = arith.constant 0 : i32
    %0 = arith.cmpi eq, %arg1, %c0_i32 : i32
    %1 = arith.extui %0 : i1 to i32
    %c0_i32_0 = arith.constant 0 : i32
    %2 = arith.cmpi ne, %1, %c0_i32_0 : i32
    scf.if %2 {
      %cst_89 = arith.constant 0.000000e+00 : f32
      %182 = vector.broadcast %cst_89 : f32 to vector<1x1x1xf32>
      %c0_90 = arith.constant 0 : index
      %c0_91 = arith.constant 0 : index
      %c0_92 = arith.constant 0 : index
      %183 = vector.load %arg8[%c0_90, %c0_91, %c0_92] : memref<1x1x1xf32, #tpu.memory_space<vmem>>, vector<1x1x1xf32>
      tpu.vector_store %arg8[%c0_90, %c0_91, %c0_92], %182 {strides = array<i32>} : memref<1x1x1xf32, #tpu.memory_space<vmem>>, vector<1x1x1xf32>,
      %cst_93 = arith.constant 0.000000e+00 : f32
      %184 = vector.broadcast %cst_93 : f32 to vector<1x1x1xf32>
      %c0_94 = arith.constant 0 : index
      %c0_95 = arith.constant 0 : index
      %c0_96 = arith.constant 0 : index
      %185 = vector.load %arg9[%c0_94, %c0_95, %c0_96] : memref<1x1x1xf32, #tpu.memory_space<vmem>>, vector<1x1x1xf32>
      tpu.vector_store %arg9[%c0_94, %c0_95, %c0_96], %184 {strides = array<i32>} : memref<1x1x1xf32, #tpu.memory_space<vmem>>, vector<1x1x1xf32>,
      %cst_97 = arith.constant 0.000000e+00 : f32
      %186 = vector.broadcast %cst_97 : f32 to vector<1x1x1xf32>
      %c0_98 = arith.constant 0 : index
      %c0_99 = arith.constant 0 : index
      %c0_100 = arith.constant 0 : index
      %187 = vector.load %arg10[%c0_98, %c0_99, %c0_100] : memref<1x1x1xf32, #tpu.memory_space<vmem>>, vector<1x1x1xf32>
      tpu.vector_store %arg10[%c0_98, %c0_99, %c0_100], %186 {strides = array<i32>} : memref<1x1x1xf32, #tpu.memory_space<vmem>>, vector<1x1x1xf32>,
      %cst_101 = arith.constant 0.000000e+00 : f32
      %188 = vector.broadcast %cst_101 : f32 to vector<1x1x1xf32>
      %c0_102 = arith.constant 0 : index
      %c0_103 = arith.constant 0 : index
      %c0_104 = arith.constant 0 : index
      %189 = vector.load %arg11[%c0_102, %c0_103, %c0_104] : memref<1x1x1xf32, #tpu.memory_space<vmem>>, vector<1x1x1xf32>
      tpu.vector_store %arg11[%c0_102, %c0_103, %c0_104], %188 {strides = array<i32>} : memref<1x1x1xf32, #tpu.memory_space<vmem>>, vector<1x1x1xf32>,
      %cst_105 = arith.constant 0.000000e+00 : f32
      %190 = vector.broadcast %cst_105 : f32 to vector<1x1x1xf32>
      %c0_106 = arith.constant 0 : index
      %c0_107 = arith.constant 0 : index
      %c0_108 = arith.constant 0 : index
      %191 = vector.load %arg12[%c0_106, %c0_107, %c0_108] : memref<1x1x1xf32, #tpu.memory_space<vmem>>, vector<1x1x1xf32>
      tpu.vector_store %arg12[%c0_106, %c0_107, %c0_108], %190 {strides = array<i32>} : memref<1x1x1xf32, #tpu.memory_space<vmem>>, vector<1x1x1xf32>,
      %cst_109 = arith.constant 0.000000e+00 : f32
      %192 = vector.broadcast %cst_109 : f32 to vector<1x1x1xf32>
      %c0_110 = arith.constant 0 : index
      %c0_111 = arith.constant 0 : index
      %c0_112 = arith.constant 0 : index
      %193 = vector.load %arg13[%c0_110, %c0_111, %c0_112] : memref<1x1x1xf32, #tpu.memory_space<vmem>>, vector<1x1x1xf32>
      tpu.vector_store %arg13[%c0_110, %c0_111, %c0_112], %192 {strides = array<i32>} : memref<1x1x1xf32, #tpu.memory_space<vmem>>, vector<1x1x1xf32>,
      %cst_113 = arith.constant 0.000000e+00 : f32
      %194 = vector.broadcast %cst_113 : f32 to vector<1x1x1xf32>
      %c0_114 = arith.constant 0 : index
      %c0_115 = arith.constant 0 : index
      %c0_116 = arith.constant 0 : index
      %195 = vector.load %arg14[%c0_114, %c0_115, %c0_116] : memref<1x1x1xf32, #tpu.memory_space<vmem>>, vector<1x1x1xf32>
      tpu.vector_store %arg14[%c0_114, %c0_115, %c0_116], %194 {strides = array<i32>} : memref<1x1x1xf32, #tpu.memory_space<vmem>>, vector<1x1x1xf32>,
    } else {
    }
    %c0 = arith.constant 0 : index
    %c0_1 = arith.constant 0 : index
    %c0_2 = arith.constant 0 : index
    %3 = vector.load %arg6[%c0, %c0_1, %c0_2] : memref<1x1x256xi32, #tpu.memory_space<vmem>>, vector<1x1x256xi32>
    %4 = vector.shape_cast %3 : vector<1x1x256xi32> to vector<1x256xi32>
    %c255_i32 = arith.constant 255 : i32
    %5 = vector.broadcast %c255_i32 : i32 to vector<1x256xi32>
    %6 = arith.cmpi ne, %4, %5 : vector<1x256xi32>
    %7 = arith.extui %6 : vector<1x256xi1> to vector<1x256xi32>
    %8 = arith.sitofp %7 : vector<1x256xi32> to vector<1x256xf32>
    %c0_3 = arith.constant 0 : index
    %c0_4 = arith.constant 0 : index
    %c0_5 = arith.constant 0 : index
    %9 = vector.load %arg2[%c0_3, %c0_4, %c0_5] : memref<1x8x256xf32, #tpu.memory_space<vmem>>, vector<1x8x256xf32>
    %10 = vector.shape_cast %9 : vector<1x8x256xf32> to vector<8x256xf32>
    %cst = arith.constant dense<0xFF800000> : vector<256xf32>
    %11 = vector.multi_reduction <maximumf>, %10, %cst [0] : vector<8x256xf32> to vector<256xf32>
    %12 = vector.shape_cast %11 : vector<256xf32> to vector<1x256xf32>
    %13 = vector.broadcast %12 : vector<1x256xf32> to vector<8x256xf32>
    %14 = arith.subf %10, %13 : vector<8x256xf32>
    %15 = math.exp %14 : vector<8x256xf32>
    %cst_6 = arith.constant dense<0.000000e+00> : vector<256xf32>
    %16 = vector.multi_reduction <add>, %15, %cst_6 [0] : vector<8x256xf32> to vector<256xf32>
    %17 = vector.shape_cast %16 : vector<256xf32> to vector<1x256xf32>
    %18 = math.log %17 : vector<1x256xf32>
    %19 = arith.addf %12, %18 : vector<1x256xf32>
    %20 = tpu.iota {dimensions = array<i32: 0>} : vector<8x256xi32>
    %21 = vector.broadcast %4 : vector<1x256xi32> to vector<8x256xi32>
    %22 = arith.cmpi eq, %20, %21 : vector<8x256xi32>
    %cst_7 = arith.constant 0.000000e+00 : f32
    %23 = vector.broadcast %cst_7 : f32 to vector<8x256xf32>
    %24 = arith.select %22, %10, %23 : vector<8x256xi1>, vector<8x256xf32>
    %cst_8 = arith.constant dense<0.000000e+00> : vector<256xf32>
    %25 = vector.multi_reduction <add>, %24, %cst_8 [0] : vector<8x256xf32> to vector<256xf32>
    %26 = vector.shape_cast %25 : vector<256xf32> to vector<1x256xf32>
    %27 = arith.subf %19, %26 : vector<1x256xf32>
    %cst_9 = arith.constant -1.000000e+00 : f32
    %28 = vector.broadcast %cst_9 : f32 to vector<1x256xf32>
    %29 = arith.select %6, %27, %28 : vector<1x256xi1>, vector<1x256xf32>
    %c0_10 = arith.constant 0 : index
    %c0_11 = arith.constant 0 : index
    %c0_12 = arith.constant 0 : index
    %30 = vector.load %arg7[%c0_10, %c0_11, %c0_12] : memref<1x1x256xf32, #tpu.memory_space<vmem>>, vector<1x1x256xf32>
    %31 = vector.shape_cast %30 : vector<1x1x256xf32> to vector<1x256xf32>
    %32 = vector.shape_cast %29 : vector<1x256xf32> to vector<1x1x256xf32>
    tpu.vector_store %arg7[%c0_10, %c0_11, %c0_12], %32 {strides = array<i32>} : memref<1x1x256xf32, #tpu.memory_space<vmem>>, vector<1x1x256xf32>,
    %cst_13 = arith.constant 0.699999988 : f32
    %33 = vector.broadcast %cst_13 : f32 to vector<1x256xf32>
    %34 = arith.cmpf ogt, %27, %33 : vector<1x256xf32>
    %35 = arith.andi %6, %34 : vector<1x256xi1>
    %c0_14 = arith.constant 0 : index
    %c0_15 = arith.constant 0 : index
    %c0_16 = arith.constant 0 : index
    %36 = vector.load %arg8[%c0_14, %c0_15, %c0_16] : memref<1x1x1xf32, #tpu.memory_space<vmem>>, vector<1x1x1xf32>
    %37 = vector.shape_cast %36 : vector<1x1x1xf32> to vector<1x1xf32>
    %38 = vector.shape_cast %8 : vector<1x256xf32> to vector<1x1x256xf32>
    %cst_17 = arith.constant dense<0.000000e+00> : vector<1xf32>
    %39 = vector.multi_reduction <add>, %38, %cst_17 [1, 2] : vector<1x1x256xf32> to vector<1xf32>
    %40 = vector.shape_cast %39 : vector<1xf32> to vector<1x1x1xf32>
    %41 = vector.extract %40[0, 0, 0] : f32 from vector<1x1x1xf32>
    %42 = vector.broadcast %41 : f32 to vector<1x1xf32>
    %43 = arith.addf %37, %42 : vector<1x1xf32>
    %c0_18 = arith.constant 0 : index
    %c0_19 = arith.constant 0 : index
    %c0_20 = arith.constant 0 : index
    %44 = vector.load %arg8[%c0_18, %c0_19, %c0_20] : memref<1x1x1xf32, #tpu.memory_space<vmem>>, vector<1x1x1xf32>
    %45 = vector.shape_cast %44 : vector<1x1x1xf32> to vector<1x1xf32>
    %46 = vector.shape_cast %43 : vector<1x1xf32> to vector<1x1x1xf32>
    tpu.vector_store %arg8[%c0_18, %c0_19, %c0_20], %46 {strides = array<i32>} : memref<1x1x1xf32, #tpu.memory_space<vmem>>, vector<1x1x1xf32>,
    %c0_21 = arith.constant 0 : index
    %c0_22 = arith.constant 0 : index
    %c0_23 = arith.constant 0 : index
    %47 = vector.load %arg9[%c0_21, %c0_22, %c0_23] : memref<1x1x1xf32, #tpu.memory_space<vmem>>, vector<1x1x1xf32>
    %48 = vector.shape_cast %47 : vector<1x1x1xf32> to vector<1x1xf32>
    %cst_24 = arith.constant 0.000000e+00 : f32
    %49 = vector.broadcast %cst_24 : f32 to vector<1x256xf32>
    %50 = arith.select %6, %27, %49 : vector<1x256xi1>, vector<1x256xf32>
    %51 = vector.shape_cast %50 : vector<1x256xf32> to vector<1x1x256xf32>
    %cst_25 = arith.constant dense<0.000000e+00> : vector<1xf32>
    %52 = vector.multi_reduction <add>, %51, %cst_25 [1, 2] : vector<1x1x256xf32> to vector<1xf32>
    %53 = vector.shape_cast %52 : vector<1xf32> to vector<1x1x1xf32>
    %54 = vector.extract %53[0, 0, 0] : f32 from vector<1x1x1xf32>
    %55 = vector.broadcast %54 : f32 to vector<1x1xf32>
    %56 = arith.addf %48, %55 : vector<1x1xf32>
    %c0_26 = arith.constant 0 : index
    %c0_27 = arith.constant 0 : index
    %c0_28 = arith.constant 0 : index
    %57 = vector.load %arg9[%c0_26, %c0_27, %c0_28] : memref<1x1x1xf32, #tpu.memory_space<vmem>>, vector<1x1x1xf32>
    %58 = vector.shape_cast %57 : vector<1x1x1xf32> to vector<1x1xf32>
    %59 = vector.shape_cast %56 : vector<1x1xf32> to vector<1x1x1xf32>
    tpu.vector_store %arg9[%c0_26, %c0_27, %c0_28], %59 {strides = array<i32>} : memref<1x1x1xf32, #tpu.memory_space<vmem>>, vector<1x1x1xf32>,
    %c0_29 = arith.constant 0 : index
    %c0_30 = arith.constant 0 : index
    %c0_31 = arith.constant 0 : index
    %60 = vector.load %arg10[%c0_29, %c0_30, %c0_31] : memref<1x1x1xf32, #tpu.memory_space<vmem>>, vector<1x1x1xf32>
    %61 = vector.shape_cast %60 : vector<1x1x1xf32> to vector<1x1xf32>
    %62 = arith.extui %35 : vector<1x256xi1> to vector<1x256xi32>
    %63 = arith.sitofp %62 : vector<1x256xi32> to vector<1x256xf32>
    %64 = vector.shape_cast %63 : vector<1x256xf32> to vector<1x1x256xf32>
    %cst_32 = arith.constant dense<0.000000e+00> : vector<1xf32>
    %65 = vector.multi_reduction <add>, %64, %cst_32 [1, 2] : vector<1x1x256xf32> to vector<1xf32>
    %66 = vector.shape_cast %65 : vector<1xf32> to vector<1x1x1xf32>
    %67 = vector.extract %66[0, 0, 0] : f32 from vector<1x1x1xf32>
    %68 = vector.broadcast %67 : f32 to vector<1x1xf32>
    %69 = arith.addf %61, %68 : vector<1x1xf32>
    %c0_33 = arith.constant 0 : index
    %c0_34 = arith.constant 0 : index
    %c0_35 = arith.constant 0 : index
    %70 = vector.load %arg10[%c0_33, %c0_34, %c0_35] : memref<1x1x1xf32, #tpu.memory_space<vmem>>, vector<1x1x1xf32>
    %71 = vector.shape_cast %70 : vector<1x1x1xf32> to vector<1x1xf32>
    %72 = vector.shape_cast %69 : vector<1x1xf32> to vector<1x1x1xf32>
    tpu.vector_store %arg10[%c0_33, %c0_34, %c0_35], %72 {strides = array<i32>} : memref<1x1x1xf32, #tpu.memory_space<vmem>>, vector<1x1x1xf32>,
    %c0_36 = arith.constant 0 : index
    %c0_37 = arith.constant 0 : index
    %c0_38 = arith.constant 0 : index
    %73 = vector.load %arg11[%c0_36, %c0_37, %c0_38] : memref<1x1x1xf32, #tpu.memory_space<vmem>>, vector<1x1x1xf32>
    %74 = vector.shape_cast %73 : vector<1x1x1xf32> to vector<1x1xf32>
    %cst_39 = arith.constant 0.000000e+00 : f32
    %75 = vector.broadcast %cst_39 : f32 to vector<1x256xf32>
    %76 = arith.select %35, %27, %75 : vector<1x256xi1>, vector<1x256xf32>
    %77 = vector.shape_cast %76 : vector<1x256xf32> to vector<1x1x256xf32>
    %cst_40 = arith.constant dense<0.000000e+00> : vector<1xf32>
    %78 = vector.multi_reduction <add>, %77, %cst_40 [1, 2] : vector<1x1x256xf32> to vector<1xf32>
    %79 = vector.shape_cast %78 : vector<1xf32> to vector<1x1x1xf32>
    %80 = vector.extract %79[0, 0, 0] : f32 from vector<1x1x1xf32>
    %81 = vector.broadcast %80 : f32 to vector<1x1xf32>
    %82 = arith.addf %74, %81 : vector<1x1xf32>
    %c0_41 = arith.constant 0 : index
    %c0_42 = arith.constant 0 : index
    %c0_43 = arith.constant 0 : index
    %83 = vector.load %arg11[%c0_41, %c0_42, %c0_43] : memref<1x1x1xf32, #tpu.memory_space<vmem>>, vector<1x1x1xf32>
    %84 = vector.shape_cast %83 : vector<1x1x1xf32> to vector<1x1xf32>
    %85 = vector.shape_cast %82 : vector<1x1xf32> to vector<1x1x1xf32>
    tpu.vector_store %arg11[%c0_41, %c0_42, %c0_43], %85 {strides = array<i32>} : memref<1x1x1xf32, #tpu.memory_space<vmem>>, vector<1x1x1xf32>,
    %c0_44 = arith.constant 0 : index
    %c0_45 = arith.constant 0 : index
    %c0_46 = arith.constant 0 : index
    %86 = vector.load %arg3[%c0_44, %c0_45, %c0_46] : memref<1x8x256xf32, #tpu.memory_space<vmem>>, vector<1x8x256xf32>
    %87 = vector.shape_cast %86 : vector<1x8x256xf32> to vector<8x256xf32>
    %cst_47 = arith.constant dense<0xFF800000> : vector<256xf32>
    %88 = vector.multi_reduction <maximumf>, %87, %cst_47 [0] : vector<8x256xf32> to vector<256xf32>
    %89 = vector.shape_cast %88 : vector<256xf32> to vector<1x256xf32>
    %90 = vector.broadcast %89 : vector<1x256xf32> to vector<8x256xf32>
    %91 = arith.subf %87, %90 : vector<8x256xf32>
    %92 = math.exp %91 : vector<8x256xf32>
    %cst_48 = arith.constant dense<0.000000e+00> : vector<256xf32>
    %93 = vector.multi_reduction <add>, %92, %cst_48 [0] : vector<8x256xf32> to vector<256xf32>
    %94 = vector.shape_cast %93 : vector<256xf32> to vector<1x256xf32>
    %95 = math.log %94 : vector<1x256xf32>
    %96 = arith.addf %89, %95 : vector<1x256xf32>
    %97 = tpu.iota {dimensions = array<i32: 0>} : vector<8x256xi32>
    %98 = vector.broadcast %4 : vector<1x256xi32> to vector<8x256xi32>
    %99 = arith.cmpi eq, %97, %98 : vector<8x256xi32>
    %cst_49 = arith.constant 0.000000e+00 : f32
    %100 = vector.broadcast %cst_49 : f32 to vector<8x256xf32>
    %101 = arith.select %99, %87, %100 : vector<8x256xi1>, vector<8x256xf32>
    %cst_50 = arith.constant dense<0.000000e+00> : vector<256xf32>
    %102 = vector.multi_reduction <add>, %101, %cst_50 [0] : vector<8x256xf32> to vector<256xf32>
    %103 = vector.shape_cast %102 : vector<256xf32> to vector<1x256xf32>
    %104 = arith.subf %96, %103 : vector<1x256xf32>
    %c0_51 = arith.constant 0 : index
    %c0_52 = arith.constant 0 : index
    %c0_53 = arith.constant 0 : index
    %105 = vector.load %arg12[%c0_51, %c0_52, %c0_53] : memref<1x1x1xf32, #tpu.memory_space<vmem>>, vector<1x1x1xf32>
    %106 = vector.shape_cast %105 : vector<1x1x1xf32> to vector<1x1xf32>
    %cst_54 = arith.constant 0.000000e+00 : f32
    %107 = vector.broadcast %cst_54 : f32 to vector<1x256xf32>
    %108 = arith.select %6, %104, %107 : vector<1x256xi1>, vector<1x256xf32>
    %109 = vector.shape_cast %108 : vector<1x256xf32> to vector<1x1x256xf32>
    %cst_55 = arith.constant dense<0.000000e+00> : vector<1xf32>
    %110 = vector.multi_reduction <add>, %109, %cst_55 [1, 2] : vector<1x1x256xf32> to vector<1xf32>
    %111 = vector.shape_cast %110 : vector<1xf32> to vector<1x1x1xf32>
    %112 = vector.extract %111[0, 0, 0] : f32 from vector<1x1x1xf32>
    %113 = vector.broadcast %112 : f32 to vector<1x1xf32>
    %114 = arith.addf %106, %113 : vector<1x1xf32>
    %c0_56 = arith.constant 0 : index
    %c0_57 = arith.constant 0 : index
    %c0_58 = arith.constant 0 : index
    %115 = vector.load %arg12[%c0_56, %c0_57, %c0_58] : memref<1x1x1xf32, #tpu.memory_space<vmem>>, vector<1x1x1xf32>
    %116 = vector.shape_cast %115 : vector<1x1x1xf32> to vector<1x1xf32>
    %117 = vector.shape_cast %114 : vector<1x1xf32> to vector<1x1x1xf32>
    tpu.vector_store %arg12[%c0_56, %c0_57, %c0_58], %117 {strides = array<i32>} : memref<1x1x1xf32, #tpu.memory_space<vmem>>, vector<1x1x1xf32>,
    %c0_59 = arith.constant 0 : index
    %c0_60 = arith.constant 0 : index
    %c0_61 = arith.constant 0 : index
    %118 = vector.load %arg4[%c0_59, %c0_60, %c0_61] : memref<1x8x256xf32, #tpu.memory_space<vmem>>, vector<1x8x256xf32>
    %119 = vector.shape_cast %118 : vector<1x8x256xf32> to vector<8x256xf32>
    %cst_62 = arith.constant dense<0xFF800000> : vector<256xf32>
    %120 = vector.multi_reduction <maximumf>, %119, %cst_62 [0] : vector<8x256xf32> to vector<256xf32>
    %121 = vector.shape_cast %120 : vector<256xf32> to vector<1x256xf32>
    %122 = vector.broadcast %121 : vector<1x256xf32> to vector<8x256xf32>
    %123 = arith.subf %119, %122 : vector<8x256xf32>
    %124 = math.exp %123 : vector<8x256xf32>
    %cst_63 = arith.constant dense<0.000000e+00> : vector<256xf32>
    %125 = vector.multi_reduction <add>, %124, %cst_63 [0] : vector<8x256xf32> to vector<256xf32>
    %126 = vector.shape_cast %125 : vector<256xf32> to vector<1x256xf32>
    %127 = math.log %126 : vector<1x256xf32>
    %128 = arith.addf %121, %127 : vector<1x256xf32>
    %129 = tpu.iota {dimensions = array<i32: 0>} : vector<8x256xi32>
    %130 = vector.broadcast %4 : vector<1x256xi32> to vector<8x256xi32>
    %131 = arith.cmpi eq, %129, %130 : vector<8x256xi32>
    %cst_64 = arith.constant 0.000000e+00 : f32
    %132 = vector.broadcast %cst_64 : f32 to vector<8x256xf32>
    %133 = arith.select %131, %119, %132 : vector<8x256xi1>, vector<8x256xf32>
    %cst_65 = arith.constant dense<0.000000e+00> : vector<256xf32>
    %134 = vector.multi_reduction <add>, %133, %cst_65 [0] : vector<8x256xf32> to vector<256xf32>
    %135 = vector.shape_cast %134 : vector<256xf32> to vector<1x256xf32>
    %136 = arith.subf %128, %135 : vector<1x256xf32>
    %c0_66 = arith.constant 0 : index
    %c0_67 = arith.constant 0 : index
    %c0_68 = arith.constant 0 : index
    %137 = vector.load %arg13[%c0_66, %c0_67, %c0_68] : memref<1x1x1xf32, #tpu.memory_space<vmem>>, vector<1x1x1xf32>
    %138 = vector.shape_cast %137 : vector<1x1x1xf32> to vector<1x1xf32>
    %cst_69 = arith.constant 0.000000e+00 : f32
    %139 = vector.broadcast %cst_69 : f32 to vector<1x256xf32>
    %140 = arith.select %6, %136, %139 : vector<1x256xi1>, vector<1x256xf32>
    %141 = vector.shape_cast %140 : vector<1x256xf32> to vector<1x1x256xf32>
    %cst_70 = arith.constant dense<0.000000e+00> : vector<1xf32>
    %142 = vector.multi_reduction <add>, %141, %cst_70 [1, 2] : vector<1x1x256xf32> to vector<1xf32>
    %143 = vector.shape_cast %142 : vector<1xf32> to vector<1x1x1xf32>
    %144 = vector.extract %143[0, 0, 0] : f32 from vector<1x1x1xf32>
    %145 = vector.broadcast %144 : f32 to vector<1x1xf32>
    %146 = arith.addf %138, %145 : vector<1x1xf32>
    %c0_71 = arith.constant 0 : index
    %c0_72 = arith.constant 0 : index
    %c0_73 = arith.constant 0 : index
    %147 = vector.load %arg13[%c0_71, %c0_72, %c0_73] : memref<1x1x1xf32, #tpu.memory_space<vmem>>, vector<1x1x1xf32>
    %148 = vector.shape_cast %147 : vector<1x1x1xf32> to vector<1x1xf32>
    %149 = vector.shape_cast %146 : vector<1x1xf32> to vector<1x1x1xf32>
    tpu.vector_store %arg13[%c0_71, %c0_72, %c0_73], %149 {strides = array<i32>} : memref<1x1x1xf32, #tpu.memory_space<vmem>>, vector<1x1x1xf32>,
    %c0_74 = arith.constant 0 : index
    %c0_75 = arith.constant 0 : index
    %c0_76 = arith.constant 0 : index
    %150 = vector.load %arg5[%c0_74, %c0_75, %c0_76] : memref<1x8x256xf32, #tpu.memory_space<vmem>>, vector<1x8x256xf32>
    %151 = vector.shape_cast %150 : vector<1x8x256xf32> to vector<8x256xf32>
    %cst_77 = arith.constant dense<0xFF800000> : vector<256xf32>
    %152 = vector.multi_reduction <maximumf>, %151, %cst_77 [0] : vector<8x256xf32> to vector<256xf32>
    %153 = vector.shape_cast %152 : vector<256xf32> to vector<1x256xf32>
    %154 = vector.broadcast %153 : vector<1x256xf32> to vector<8x256xf32>
    %155 = arith.subf %151, %154 : vector<8x256xf32>
    %156 = math.exp %155 : vector<8x256xf32>
    %cst_78 = arith.constant dense<0.000000e+00> : vector<256xf32>
    %157 = vector.multi_reduction <add>, %156, %cst_78 [0] : vector<8x256xf32> to vector<256xf32>
    %158 = vector.shape_cast %157 : vector<256xf32> to vector<1x256xf32>
    %159 = math.log %158 : vector<1x256xf32>
    %160 = arith.addf %153, %159 : vector<1x256xf32>
    %161 = tpu.iota {dimensions = array<i32: 0>} : vector<8x256xi32>
    %162 = vector.broadcast %4 : vector<1x256xi32> to vector<8x256xi32>
    %163 = arith.cmpi eq, %161, %162 : vector<8x256xi32>
    %cst_79 = arith.constant 0.000000e+00 : f32
    %164 = vector.broadcast %cst_79 : f32 to vector<8x256xf32>
    %165 = arith.select %163, %151, %164 : vector<8x256xi1>, vector<8x256xf32>
    %cst_80 = arith.constant dense<0.000000e+00> : vector<256xf32>
    %166 = vector.multi_reduction <add>, %165, %cst_80 [0] : vector<8x256xf32> to vector<256xf32>
    %167 = vector.shape_cast %166 : vector<256xf32> to vector<1x256xf32>
    %168 = arith.subf %160, %167 : vector<1x256xf32>
    %c0_81 = arith.constant 0 : index
    %c0_82 = arith.constant 0 : index
    %c0_83 = arith.constant 0 : index
    %169 = vector.load %arg14[%c0_81, %c0_82, %c0_83] : memref<1x1x1xf32, #tpu.memory_space<vmem>>, vector<1x1x1xf32>
    %170 = vector.shape_cast %169 : vector<1x1x1xf32> to vector<1x1xf32>
    %cst_84 = arith.constant 0.000000e+00 : f32
    %171 = vector.broadcast %cst_84 : f32 to vector<1x256xf32>
    %172 = arith.select %6, %168, %171 : vector<1x256xi1>, vector<1x256xf32>
    %173 = vector.shape_cast %172 : vector<1x256xf32> to vector<1x1x256xf32>
    %cst_85 = arith.constant dense<0.000000e+00> : vector<1xf32>
    %174 = vector.multi_reduction <add>, %173, %cst_85 [1, 2] : vector<1x1x256xf32> to vector<1xf32>
    %175 = vector.shape_cast %174 : vector<1xf32> to vector<1x1x1xf32>
    %176 = vector.extract %175[0, 0, 0] : f32 from vector<1x1x1xf32>
    %177 = vector.broadcast %176 : f32 to vector<1x1xf32>
    %178 = arith.addf %170, %177 : vector<1x1xf32>
    %c0_86 = arith.constant 0 : index
    %c0_87 = arith.constant 0 : index
    %c0_88 = arith.constant 0 : index
    %179 = vector.load %arg14[%c0_86, %c0_87, %c0_88] : memref<1x1x1xf32, #tpu.memory_space<vmem>>, vector<1x1x1xf32>
    %180 = vector.shape_cast %179 : vector<1x1x1xf32> to vector<1x1xf32>
    %181 = vector.shape_cast %178 : vector<1x1xf32> to vector<1x1x1xf32>
    tpu.vector_store %arg14[%c0_86, %c0_87, %c0_88], %181 {strides = array<i32>} : memref<1x1x1xf32, #tpu.memory_space<vmem>>, vector<1x1x1xf32>,
    return
  }
  func.func @transform_0(%arg0: i32, %arg1: i32) -> (i32, i32, i32) {
    %c0_i32 = arith.constant 0 : i32
    %c0_i32_0 = arith.constant 0 : i32
    return %arg0, %c0_i32, %arg1 : i32, i32, i32
  }
  func.func @transform_1(%arg0: i32, %arg1: i32) -> (i32, i32, i32) {
    %c0_i32 = arith.constant 0 : i32
    %c0_i32_0 = arith.constant 0 : i32
    return %arg0, %c0_i32, %arg1 : i32, i32, i32
  }
  func.func @transform_2(%arg0: i32, %arg1: i32) -> (i32, i32, i32) {
    %c0_i32 = arith.constant 0 : i32
    %c0_i32_0 = arith.constant 0 : i32
    return %arg0, %c0_i32, %arg1 : i32, i32, i32
  }
  func.func @transform_3(%arg0: i32, %arg1: i32) -> (i32, i32, i32) {
    %c0_i32 = arith.constant 0 : i32
    %c0_i32_0 = arith.constant 0 : i32
    return %arg0, %c0_i32, %arg1 : i32, i32, i32
  }
  func.func @transform_4(%arg0: i32, %arg1: i32) -> (i32, i32, i32) {
    %c0_i32 = arith.constant 0 : i32
    %c0_i32_0 = arith.constant 0 : i32
    return %arg0, %c0_i32, %arg1 : i32, i32, i32
  }
  func.func @transform_5(%arg0: i32, %arg1: i32) -> (i32, i32, i32) {
    %c0_i32 = arith.constant 0 : i32
    %c0_i32_0 = arith.constant 0 : i32
    return %arg0, %c0_i32, %arg1 : i32, i32, i32
  }
  func.func @transform_6(%arg0: i32, %arg1: i32) -> (i32, i32, i32) {
    %c0_i32 = arith.constant 0 : i32
    %c0_i32_0 = arith.constant 0 : i32
    %c0_i32_1 = arith.constant 0 : i32
    return %arg0, %c0_i32, %c0_i32_0 : i32, i32, i32
  }
  func.func @transform_7(%arg0: i32, %arg1: i32) -> (i32, i32, i32) {
    %c0_i32 = arith.constant 0 : i32
    %c0_i32_0 = arith.constant 0 : i32
    %c0_i32_1 = arith.constant 0 : i32
    return %arg0, %c0_i32, %c0_i32_0 : i32, i32, i32
  }
  func.func @transform_8(%arg0: i32, %arg1: i32) -> (i32, i32, i32) {
    %c0_i32 = arith.constant 0 : i32
    %c0_i32_0 = arith.constant 0 : i32
    %c0_i32_1 = arith.constant 0 : i32
    return %arg0, %c0_i32, %c0_i32_0 : i32, i32, i32
  }
  func.func @transform_9(%arg0: i32, %arg1: i32) -> (i32, i32, i32) {
    %c0_i32 = arith.constant 0 : i32
    %c0_i32_0 = arith.constant 0 : i32
    %c0_i32_1 = arith.constant 0 : i32
    return %arg0, %c0_i32, %c0_i32_0 : i32, i32, i32
  }
  func.func @transform_10(%arg0: i32, %arg1: i32) -> (i32, i32, i32) {
    %c0_i32 = arith.constant 0 : i32
    %c0_i32_0 = arith.constant 0 : i32
    %c0_i32_1 = arith.constant 0 : i32
    return %arg0, %c0_i32, %c0_i32_0 : i32, i32, i32
  }
  func.func @transform_11(%arg0: i32, %arg1: i32) -> (i32, i32, i32) {
    %c0_i32 = arith.constant 0 : i32
    %c0_i32_0 = arith.constant 0 : i32
    %c0_i32_1 = arith.constant 0 : i32
    return %arg0, %c0_i32, %c0_i32_0 : i32, i32, i32
  }
  func.func @transform_12(%arg0: i32, %arg1: i32) -> (i32, i32, i32) {
    %c0_i32 = arith.constant 0 : i32
    %c0_i32_0 = arith.constant 0 : i32
    %c0_i32_1 = arith.constant 0 : i32
    return %arg0, %c0_i32, %c0_i32_0 : i32, i32, i32
  }
}

</mosaic_0001>

<llo_original>
// kernel: bisenetv2_loss.1
$region0: #{bisenetv2_loss.1}
  #allocation0 [shape = 'u32[]', space=smem, size = 0x4, offset = 0x4, fixed_abs, tag = 'smem constant byte address 0x4 - core index']
  #allocation1 [shape = 'u32[144,128]{1,0:T(1,128)}', space=vmem, size = 0x12000, scoped, tag = 'internal scratch']
  %s0 = inlined_call_operand.vmem [shape: f32[2,8,256], index: 0, kind: input, shape index: {}]
  %s1 = inlined_call_operand.vmem [shape: f32[2,8,256], index: 1, kind: input, shape index: {}]
  %s2 = inlined_call_operand.vmem [shape: f32[2,8,256], index: 2, kind: input, shape index: {}]
  %s3 = inlined_call_operand.vmem [shape: f32[2,8,256], index: 3, kind: input, shape index: {}]
  %s4 = inlined_call_operand.vmem [shape: s32[2,1,256], index: 4, kind: input, shape index: {}]
  %s5 = inlined_call_operand.vmem [shape: f32[2,1,256], index: 5, kind: output, shape index: {0}]
  %s6 = inlined_call_operand.vmem [shape: f32[2,1,1], index: 6, kind: output, shape index: {1}]
  %s7 = inlined_call_operand.vmem [shape: f32[2,1,1], index: 7, kind: output, shape index: {2}]
  %s8 = inlined_call_operand.vmem [shape: f32[2,1,1], index: 8, kind: output, shape index: {3}]
  %s9 = inlined_call_operand.vmem [shape: f32[2,1,1], index: 9, kind: output, shape index: {4}]
  %s10 = inlined_call_operand.vmem [shape: f32[2,1,1], index: 10, kind: output, shape index: {5}]
  %s11 = inlined_call_operand.vmem [shape: f32[2,1,1], index: 11, kind: output, shape index: {6}]
  %s12 = inlined_call_operand.vmem [shape: f32[2,1,1], index: 12, kind: output, shape index: {7}]
  %13 = xla_tuple %s5, %s6, %s7, %s8, %s9, %s10, %s11, %s12
  %s14 = sld [smem:[#allocation0]]
  $region113: #{bisenetv2_loss.1} parent=0
    _
  %s16 = ssub.s32 1, %s14
  %s17 = scalar_select 0, %s16, %s14
  loop: start=0, step=1, limit=4
  $region2: #{bisenetv2_loss.1} parent=0 // loop_pre_header
    _
  $region3: #{bisenetv2_loss.1} parent=0 // loop_header
    %s19 = sphi 0, %s23
    %p20 = scmp.ge.s32.totalorder %s19, 4
    %s26 = sphi 0, %s38
    %s27 = sphi 0, %s34
    %s28 = sphi 0, %s26
    %s29 = sphi 0, %s27
    %s30 = sphi 0, %s28
    %s31 = sphi 0, %s29
    %s43 = sphi 0, %s45
    %s46 = sphi 0, %s43
    %s47 = sphi 0, %s46
    %s63 = sphi 0, %s47
    %s71 = sphi 0, %s73
    %s74 = sphi 0, %s71
    %s75 = sphi 0, %s74
    %s91 = sphi 0, %s75
    %s99 = sphi 0, %s101
    %s102 = sphi 0, %s99
    %s103 = sphi 0, %s102
    %s119 = sphi 0, %s103
    %s127 = sphi 0, %s129
    %s130 = sphi 0, %s127
    %s131 = sphi 0, %s130
    %s147 = sphi 0, %s131
    %s155 = sphi 0, %s157
    %s158 = sphi 0, %s155
    %s159 = sphi 0, %s158
    %s175 = sphi 0, %s159
    %s183 = sphi 0, %s185
    %s186 = sphi 0, %s183
    %s187 = sphi 0, %s186
    %s203 = sphi 0, %s187
    %s209 = sphi 0, %s211
    %s212 = sphi 0, %s209
    %s213 = sphi 0, %s212
    %s229 = sphi 0, %s213
    %s235 = sphi 0, %s237
    %s238 = sphi 0, %s235
    %s239 = sphi 0, %s238
    %s255 = sphi 0, %s239
    %s261 = sphi 0, %s263
    %s264 = sphi 0, %s261
    %s265 = sphi 0, %s264
    %s281 = sphi 0, %s265
    %s287 = sphi 0, %s289
    %s290 = sphi 0, %s287
    %s291 = sphi 0, %s290
    %s307 = sphi 0, %s291
    %s313 = sphi 0, %s315
    %s316 = sphi 0, %s313
    %s317 = sphi 0, %s316
    %s333 = sphi 0, %s317
    %s339 = sphi 0, %s341
    %s342 = sphi 0, %s339
    %s343 = sphi 0, %s342
    %s359 = sphi 0, %s343
    %s365 = sphi 0, %s367
    %s368 = sphi 0, %s365
    %s369 = sphi 0, %s368
    %s385 = sphi 0, %s369
  $region4: #{bisenetv2_loss.1} parent=0 // loop_header_branch
    %22 = sbr.rel (%p20) target = $region8
  $region5: #{bisenetv2_loss.1} parent=0 // loop_body
    %s24 = ssub.s32 %s19, 1
    %s25 = ssub.s32 %s19, 2
    %s32 = sadd.s32 1, %s27
    %p33 = scmp.ge.s32.totalorder %s32, 1
    %s34 = scalar_select %p33, 0, %s32
    %s35 = sadd.s32 1, %s26
    %s36 = scalar_select %p33, %s35, %s26
    %p37 = scmp.ge.s32.totalorder %s36, 2
    %s38 = scalar_select %p37, 0, %s36
    %s39 = ssub.s32 %s26, %s38
    %s40 = ssub.s32 %s27, %s34
    %s41 = sor.u32 %s39, %s40
    %p42 = scmp.eq.s32.totalorder %s41, 0
    %s44 = sadd.s32 %s43, 1
    %s45 = scalar_select %p42, %s43, %s44
    %p48 = pneg %p42
    %p49 = scmp.eq.s32.totalorder %s19, 1
    %p50 = por %p48, %p49
    %p51 = scmp.ne.s32.totalorder %s43, %s46
    %p52 = scmp.eq.s32.totalorder %s19, 0
    %p53 = por %p51, %p52
    %p54 = scmp.ne.s32.totalorder %s43, %s46
    %p55 = scmp.eq.s32.totalorder %s24, 1
    %p56 = por %p54, %p55
    %p57 = scmp.ne.s32.totalorder %s46, %s47
    %p58 = scmp.eq.s32.totalorder %s24, 0
    %p59 = por %p57, %p58
    %p60 = scmp.ne.s32.totalorder %s46, %s47
    %p61 = scmp.eq.s32.totalorder %s25, 1
    %p62 = por %p60, %p61
    %p64 = scmp.ne.s32.totalorder %s47, %s63
    %p65 = scmp.eq.s32.totalorder %s25, 0
    %p66 = por %p64, %p65
    %s67 = ssub.s32 %s26, %s38
    %s68 = ssub.s32 %s27, %s34
    %s69 = sor.u32 %s67, %s68
    %p70 = scmp.eq.s32.totalorder %s69, 0
    %s72 = sadd.s32 %s71, 1
    %s73 = scalar_select %p70, %s71, %s72
    %p76 = pneg %p70
    %p77 = scmp.eq.s32.totalorder %s19, 1
    %p78 = por %p76, %p77
    %p79 = scmp.ne.s32.totalorder %s71, %s74
    %p80 = scmp.eq.s32.totalorder %s19, 0
    %p81 = por %p79, %p80
    %p82 = scmp.ne.s32.totalorder %s71, %s74
    %p83 = scmp.eq.s32.totalorder %s24, 1
    %p84 = por %p82, %p83
    %p85 = scmp.ne.s32.totalorder %s74, %s75
    %p86 = scmp.eq.s32.totalorder %s24, 0
    %p87 = por %p85, %p86
    %p88 = scmp.ne.s32.totalorder %s74, %s75
    %p89 = scmp.eq.s32.totalorder %s25, 1
    %p90 = por %p88, %p89
    %p92 = scmp.ne.s32.totalorder %s75, %s91
    %p93 = scmp.eq.s32.totalorder %s25, 0
    %p94 = por %p92, %p93
    %s95 = ssub.s32 %s26, %s38
    %s96 = ssub.s32 %s27, %s34
    %s97 = sor.u32 %s95, %s96
    %p98 = scmp.eq.s32.totalorder %s97, 0
    %s100 = sadd.s32 %s99, 1
    %s101 = scalar_select %p98, %s99, %s100
    %p104 = pneg %p98
    %p105 = scmp.eq.s32.totalorder %s19, 1
    %p106 = por %p104, %p105
    %p107 = scmp.ne.s32.totalorder %s99, %s102
    %p108 = scmp.eq.s32.totalorder %s19, 0
    %p109 = por %p107, %p108
    %p110 = scmp.ne.s32.totalorder %s99, %s102
    %p111 = scmp.eq.s32.totalorder %s24, 1
    %p112 = por %p110, %p111
    %p113 = scmp.ne.s32.totalorder %s102, %s103
    %p114 = scmp.eq.s32.totalorder %s24, 0
    %p115 = por %p113, %p114
    %p116 = scmp.ne.s32.totalorder %s102, %s103
    %p117 = scmp.eq.s32.totalorder %s25, 1
    %p118 = por %p116, %p117
    %p120 = scmp.ne.s32.totalorder %s103, %s119
    %p121 = scmp.eq.s32.totalorder %s25, 0
    %p122 = por %p120, %p121
    %s123 = ssub.s32 %s26, %s38
    %s124 = ssub.s32 %s27, %s34
    %s125 = sor.u32 %s123, %s124
    %p126 = scmp.eq.s32.totalorder %s125, 0
    %s128 = sadd.s32 %s127, 1
    %s129 = scalar_select %p126, %s127, %s128
    %p132 = pneg %p126
    %p133 = scmp.eq.s32.totalorder %s19, 1
    %p134 = por %p132, %p133
    %p135 = scmp.ne.s32.totalorder %s127, %s130
    %p136 = scmp.eq.s32.totalorder %s19, 0
    %p137 = por %p135, %p136
    %p138 = scmp.ne.s32.totalorder %s127, %s130
    %p139 = scmp.eq.s32.totalorder %s24, 1
    %p140 = por %p138, %p139
    %p141 = scmp.ne.s32.totalorder %s130, %s131
    %p142 = scmp.eq.s32.totalorder %s24, 0
    %p143 = por %p141, %p142
    %p144 = scmp.ne.s32.totalorder %s130, %s131
    %p145 = scmp.eq.s32.totalorder %s25, 1
    %p146 = por %p144, %p145
    %p148 = scmp.ne.s32.totalorder %s131, %s147
    %p149 = scmp.eq.s32.totalorder %s25, 0
    %p150 = por %p148, %p149
    %s151 = ssub.s32 %s26, %s38
    %s152 = ssub.s32 %s27, %s34
    %s153 = sor.u32 %s151, %s152
    %p154 = scmp.eq.s32.totalorder %s153, 0
    %s156 = sadd.s32 %s155, 1
    %s157 = scalar_select %p154, %s155, %s156
    %p160 = pneg %p154
    %p161 = scmp.eq.s32.totalorder %s19, 1
    %p162 = por %p160, %p161
    %p163 = scmp.ne.s32.totalorder %s155, %s158
    %p164 = scmp.eq.s32.totalorder %s19, 0
    %p165 = por %p163, %p164
    %p166 = scmp.ne.s32.totalorder %s155, %s158
    %p167 = scmp.eq.s32.totalorder %s24, 1
    %p168 = por %p166, %p167
    %p169 = scmp.ne.s32.totalorder %s158, %s159
    %p170 = scmp.eq.s32.totalorder %s24, 0
    %p171 = por %p169, %p170
    %p172 = scmp.ne.s32.totalorder %s158, %s159
    %p173 = scmp.eq.s32.totalorder %s25, 1
    %p174 = por %p172, %p173
    %p176 = scmp.ne.s32.totalorder %s159, %s175
    %p177 = scmp.eq.s32.totalorder %s25, 0
    %p178 = por %p176, %p177
    %s179 = ssub.s32 %s26, %s38
    %s180 = ssub.s32 %s27, %s34
    %s181 = sor.u32 %s179, %s180
    %p182 = scmp.eq.s32.totalorder %s181, 0
    %s184 = sadd.s32 %s183, 1
    %s185 = scalar_select %p182, %s183, %s184
    %p188 = pneg %p182
    %p189 = scmp.eq.s32.totalorder %s19, 1
    %p190 = por %p188, %p189
    %p191 = scmp.ne.s32.totalorder %s183, %s186
    %p192 = scmp.eq.s32.totalorder %s19, 0
    %p193 = por %p191, %p192
    %p194 = scmp.ne.s32.totalorder %s183, %s186
    %p195 = scmp.eq.s32.totalorder %s24, 1
    %p196 = por %p194, %p195
    %p197 = scmp.ne.s32.totalorder %s186, %s187
    %p198 = scmp.eq.s32.totalorder %s24, 0
    %p199 = por %p197, %p198
    %p200 = scmp.ne.s32.totalorder %s186, %s187
    %p201 = scmp.eq.s32.totalorder %s25, 1
    %p202 = por %p200, %p201
    %p204 = scmp.ne.s32.totalorder %s187, %s203
    %p205 = scmp.eq.s32.totalorder %s25, 0
    %p206 = por %p204, %p205
    %s207 = ssub.s32 %s26, %s38
    %p208 = scmp.eq.s32.totalorder %s207, 0
    %s210 = sadd.s32 %s209, 1
    %s211 = scalar_select %p208, %s209, %s210
    %p214 = pneg %p208
    %p215 = scmp.eq.s32.totalorder %s19, 1
    %p216 = por %p214, %p215
    %p217 = scmp.ne.s32.totalorder %s209, %s212
    %p218 = scmp.eq.s32.totalorder %s19, 0
    %p219 = por %p217, %p218
    %p220 = scmp.ne.s32.totalorder %s209, %s212
    %p221 = scmp.eq.s32.totalorder %s24, 1
    %p222 = por %p220, %p221
    %p223 = scmp.ne.s32.totalorder %s212, %s213
    %p224 = scmp.eq.s32.totalorder %s24, 0
    %p225 = por %p223, %p224
    %p226 = scmp.ne.s32.totalorder %s212, %s213
    %p227 = scmp.eq.s32.totalorder %s25, 1
    %p228 = por %p226, %p227
    %p230 = scmp.ne.s32.totalorder %s213, %s229
    %p231 = scmp.eq.s32.totalorder %s25, 0
    %p232 = por %p230, %p231
    %s233 = ssub.s32 %s26, %s38
    %p234 = scmp.eq.s32.totalorder %s233, 0
    %s236 = sadd.s32 %s235, 1
    %s237 = scalar_select %p234, %s235, %s236
    %p240 = pneg %p234
    %p241 = scmp.eq.s32.totalorder %s19, 1
    %p242 = por %p240, %p241
    %p243 = scmp.ne.s32.totalorder %s235, %s238
    %p244 = scmp.eq.s32.totalorder %s19, 0
    %p245 = por %p243, %p244
    %p246 = scmp.ne.s32.totalorder %s235, %s238
    %p247 = scmp.eq.s32.totalorder %s24, 1
    %p248 = por %p246, %p247
    %p249 = scmp.ne.s32.totalorder %s238, %s239
    %p250 = scmp.eq.s32.totalorder %s24, 0
    %p251 = por %p249, %p250
    %p252 = scmp.ne.s32.totalorder %s238, %s239
    %p253 = scmp.eq.s32.totalorder %s25, 1
    %p254 = por %p252, %p253
    %p256 = scmp.ne.s32.totalorder %s239, %s255
    %p257 = scmp.eq.s32.totalorder %s25, 0
    %p258 = por %p256, %p257
    %s259 = ssub.s32 %s26, %s38
    %p260 = scmp.eq.s32.totalorder %s259, 0
    %s262 = sadd.s32 %s261, 1
    %s263 = scalar_select %p260, %s261, %s262
    %p266 = pneg %p260
    %p267 = scmp.eq.s32.totalorder %s19, 1
    %p268 = por %p266, %p267
    %p269 = scmp.ne.s32.totalorder %s261, %s264
    %p270 = scmp.eq.s32.totalorder %s19, 0
    %p271 = por %p269, %p270
    %p272 = scmp.ne.s32.totalorder %s261, %s264
    %p273 = scmp.eq.s32.totalorder %s24, 1
    %p274 = por %p272, %p273
    %p275 = scmp.ne.s32.totalorder %s264, %s265
    %p276 = scmp.eq.s32.totalorder %s24, 0
    %p277 = por %p275, %p276
    %p278 = scmp.ne.s32.totalorder %s264, %s265
    %p279 = scmp.eq.s32.totalorder %s25, 1
    %p280 = por %p278, %p279
    %p282 = scmp.ne.s32.totalorder %s265, %s281
    %p283 = scmp.eq.s32.totalorder %s25, 0
    %p284 = por %p282, %p283
    %s285 = ssub.s32 %s26, %s38
    %p286 = scmp.eq.s32.totalorder %s285, 0
    %s288 = sadd.s32 %s287, 1
    %s289 = scalar_select %p286, %s287, %s288
    %p292 = pneg %p286
    %p293 = scmp.eq.s32.totalorder %s19, 1
    %p294 = por %p292, %p293
    %p295 = scmp.ne.s32.totalorder %s287, %s290
    %p296 = scmp.eq.s32.totalorder %s19, 0
    %p297 = por %p295, %p296
    %p298 = scmp.ne.s32.totalorder %s287, %s290
    %p299 = scmp.eq.s32.totalorder %s24, 1
    %p300 = por %p298, %p299
    %p301 = scmp.ne.s32.totalorder %s290, %s291
    %p302 = scmp.eq.s32.totalorder %s24, 0
    %p303 = por %p301, %p302
    %p304 = scmp.ne.s32.totalorder %s290, %s291
    %p305 = scmp.eq.s32.totalorder %s25, 1
    %p306 = por %p304, %p305
    %p308 = scmp.ne.s32.totalorder %s291, %s307
    %p309 = scmp.eq.s32.totalorder %s25, 0
    %p310 = por %p308, %p309
    %s311 = ssub.s32 %s26, %s38
    %p312 = scmp.eq.s32.totalorder %s311, 0
    %s314 = sadd.s32 %s313, 1
    %s315 = scalar_select %p312, %s313, %s314
    %p318 = pneg %p312
    %p319 = scmp.eq.s32.totalorder %s19, 1
    %p320 = por %p318, %p319
    %p321 = scmp.ne.s32.totalorder %s313, %s316
    %p322 = scmp.eq.s32.totalorder %s19, 0
    %p323 = por %p321, %p322
    %p324 = scmp.ne.s32.totalorder %s313, %s316
    %p325 = scmp.eq.s32.totalorder %s24, 1
    %p326 = por %p324, %p325
    %p327 = scmp.ne.s32.totalorder %s316, %s317
    %p328 = scmp.eq.s32.totalorder %s24, 0
    %p329 = por %p327, %p328
    %p330 = scmp.ne.s32.totalorder %s316, %s317
    %p331 = scmp.eq.s32.totalorder %s25, 1
    %p332 = por %p330, %p331
    %p334 = scmp.ne.s32.totalorder %s317, %s333
    %p335 = scmp.eq.s32.totalorder %s25, 0
    %p336 = por %p334, %p335
    %s337 = ssub.s32 %s26, %s38
    %p338 = scmp.eq.s32.totalorder %s337, 0
    %s340 = sadd.s32 %s339, 1
    %s341 = scalar_select %p338, %s339, %s340
    %p344 = pneg %p338
    %p345 = scmp.eq.s32.totalorder %s19, 1
    %p346 = por %p344, %p345
    %p347 = scmp.ne.s32.totalorder %s339, %s342
    %p348 = scmp.eq.s32.totalorder %s19, 0
    %p349 = por %p347, %p348
    %p350 = scmp.ne.s32.totalorder %s339, %s342
    %p351 = scmp.eq.s32.totalorder %s24, 1
    %p352 = por %p350, %p351
    %p353 = scmp.ne.s32.totalorder %s342, %s343
    %p354 = scmp.eq.s32.totalorder %s24, 0
    %p355 = por %p353, %p354
    %p356 = scmp.ne.s32.totalorder %s342, %s343
    %p357 = scmp.eq.s32.totalorder %s25, 1
    %p358 = por %p356, %p357
    %p360 = scmp.ne.s32.totalorder %s343, %s359
    %p361 = scmp.eq.s32.totalorder %s25, 0
    %p362 = por %p360, %p361
    %s363 = ssub.s32 %s26, %s38
    %p364 = scmp.eq.s32.totalorder %s363, 0
    %s366 = sadd.s32 %s365, 1
    %s367 = scalar_select %p364, %s365, %s366
    %p370 = pneg %p364
    %p371 = scmp.eq.s32.totalorder %s19, 1
    %p372 = por %p370, %p371
    %p373 = scmp.ne.s32.totalorder %s365, %s368
    %p374 = scmp.eq.s32.totalorder %s19, 0
    %p375 = por %p373, %p374
    %p376 = scmp.ne.s32.totalorder %s365, %s368
    %p377 = scmp.eq.s32.totalorder %s24, 1
    %p378 = por %p376, %p377
    %p379 = scmp.ne.s32.totalorder %s368, %s369
    %p380 = scmp.eq.s32.totalorder %s24, 0
    %p381 = por %p379, %p380
    %p382 = scmp.ne.s32.totalorder %s368, %s369
    %p383 = scmp.eq.s32.totalorder %s25, 1
    %p384 = por %p382, %p383
    %p386 = scmp.ne.s32.totalorder %s369, %s385
    %p387 = scmp.eq.s32.totalorder %s25, 0
    %p388 = por %p386, %p387
    %p389 = scmp.le.s32.totalorder 1, %s19
    %p390 = scmp.lt.s32.totalorder %s19, 3
    %p391 = pnand %p389, %p390
    %p392 = pneg %p391
    // Predicated region
    $region9: #{bisenetv2_loss.1} parent=5 // pred_check
      _
    $region10: #{bisenetv2_loss.1} parent=5 // pred_check_branch
      %394 = sbr.rel (%p391) target = $region12
    $region11: #{bisenetv2_loss.1} parent=5 // pred_region
      %s395 = ssub.s32 %s19, 1
    $region12: #{bisenetv2_loss.1} parent=5 // pred_fallthru
      _
    %p396 = scmp.lt.s32.totalorder %s19, 2
    // Predicated region
    $region13: #{bisenetv2_loss.1} parent=5 // pred_check
      %p397 = pneg %p396
    $region14: #{bisenetv2_loss.1} parent=5 // pred_check_branch
      %399 = sbr.rel (%p397) target = $region16
    $region15: #{bisenetv2_loss.1} parent=5 // pred_region
      // Predicated region
      $region17: #{bisenetv2_loss.1} parent=15 // pred_check
        %p400 = pneg %p53
      $region18: #{bisenetv2_loss.1} parent=15 // pred_check_branch
        %402 = sbr.rel (%p400) target = $region20
      $region19: #{bisenetv2_loss.1} parent=15 // pred_region
        %s403 = smul.u32 2, %s27
        %p404 = scmp.lt.s32.totalorder %s26, 1
        %s405 = scalar_select %p404, %s26, 1
        %p406 = scmp.lt.s32.totalorder %s403, 1
        %s407 = scalar_select %p406, %s403, 1
        %s408 = smul.addr %s405, 2
        %s409 = sadd.s32 %s407, %s408
        %s410 = smul.addr %s409, 8
        %s411 = scalar_lea.vmem %s0, %s410
        %s412 = smul.u32 2, %s27
      $region20: #{bisenetv2_loss.1} parent=15 // pred_fallthru
        _
      // Predicated region
      $region21: #{bisenetv2_loss.1} parent=15 // pred_check
        %p413 = pneg %p81
      $region22: #{bisenetv2_loss.1} parent=15 // pred_check_branch
        %415 = sbr.rel (%p413) target = $region24
      $region23: #{bisenetv2_loss.1} parent=15 // pred_region
        %s416 = smul.u32 2, %s27
        %p417 = scmp.lt.s32.totalorder %s26, 1
        %s418 = scalar_select %p417, %s26, 1
        %p419 = scmp.lt.s32.totalorder %s416, 1
        %s420 = scalar_select %p419, %s416, 1
        %s421 = smul.addr %s418, 2
        %s422 = sadd.s32 %s420, %s421
        %s423 = smul.addr %s422, 8
        %s424 = scalar_lea.vmem %s1, %s423
        %s425 = smul.u32 2, %s27
      $region24: #{bisenetv2_loss.1} parent=15 // pred_fallthru
        _
      // Predicated region
      $region25: #{bisenetv2_loss.1} parent=15 // pred_check
        %p426 = pneg %p109
      $region26: #{bisenetv2_loss.1} parent=15 // pred_check_branch
        %428 = sbr.rel (%p426) target = $region28
      $region27: #{bisenetv2_loss.1} parent=15 // pred_region
        %s429 = smul.u32 2, %s27
        %p430 = scmp.lt.s32.totalorder %s26, 1
        %s431 = scalar_select %p430, %s26, 1
        %p432 = scmp.lt.s32.totalorder %s429, 1
        %s433 = scalar_select %p432, %s429, 1
        %s434 = smul.addr %s431, 2
        %s435 = sadd.s32 %s433, %s434
        %s436 = smul.addr %s435, 8
        %s437 = scalar_lea.vmem %s2, %s436
        %s438 = smul.u32 2, %s27
      $region28: #{bisenetv2_loss.1} parent=15 // pred_fallthru
        _
      // Predicated region
      $region29: #{bisenetv2_loss.1} parent=15 // pred_check
        %p439 = pneg %p137
      $region30: #{bisenetv2_loss.1} parent=15 // pred_check_branch
        %441 = sbr.rel (%p439) target = $region32
      $region31: #{bisenetv2_loss.1} parent=15 // pred_region
        %s442 = smul.u32 2, %s27
        %p443 = scmp.lt.s32.totalorder %s26, 1
        %s444 = scalar_select %p443, %s26, 1
        %p445 = scmp.lt.s32.totalorder %s442, 1
        %s446 = scalar_select %p445, %s442, 1
        %s447 = smul.addr %s444, 2
        %s448 = sadd.s32 %s446, %s447
        %s449 = smul.addr %s448, 8
        %s450 = scalar_lea.vmem %s3, %s449
        %s451 = smul.u32 2, %s27
      $region32: #{bisenetv2_loss.1} parent=15 // pred_fallthru
        _
      // Predicated region
      $region33: #{bisenetv2_loss.1} parent=15 // pred_check
        %p452 = pneg %p165
      $region34: #{bisenetv2_loss.1} parent=15 // pred_check_branch
        %454 = sbr.rel (%p452) target = $region36
      $region35: #{bisenetv2_loss.1} parent=15 // pred_region
        %s455 = smul.u32 2, %s27
        %p456 = scmp.lt.s32.totalorder %s26, 1
        %s457 = scalar_select %p456, %s26, 1
        %p458 = scmp.lt.s32.totalorder %s455, 1
        %s459 = scalar_select %p458, %s455, 1
        %s460 = smul.addr %s457, 2
        %s461 = sadd.s32 %s459, %s460
        %s462 = scalar_lea.vmem %s4, %s461
        %s463 = smul.u32 2, %s27
      $region36: #{bisenetv2_loss.1} parent=15 // pred_fallthru
        _
    $region16: #{bisenetv2_loss.1} parent=5 // pred_fallthru
      _
    %p464 = scmp.le.s32.totalorder 1, %s19
    %p465 = scmp.lt.s32.totalorder %s19, 3
    %p466 = pnand %p464, %p465
    %p467 = pneg %p466
    // Predicated region
    $region37: #{bisenetv2_loss.1} parent=5 // pred_check
      _
    $region38: #{bisenetv2_loss.1} parent=5 // pred_check_branch
      %469 = sbr.rel (%p466) target = $region40
    $region39: #{bisenetv2_loss.1} parent=5 // pred_region
      %s470 = ssub.s32 %s19, 1
      %s471 = smul.u32 2, %s29
      %p472 = scmp.lt.s32.totalorder %s28, 1
      %s473 = scalar_select %p472, %s28, 1
      %p474 = scmp.lt.s32.totalorder %s471, 1
      %s475 = scalar_select %p474, %s471, 1
      %s476 = smul.addr %s473, 2
      %s477 = sadd.s32 %s475, %s476
      %s478 = smul.addr %s477, 8
      %s479 = scalar_lea.vmem %s0, %s478
      %p480 = pneg %p59
      %p481 = pneg %p56
      %s482 = smul.u32 2, %s29
      %p483 = scmp.lt.s32.totalorder %s28, 1
      %s484 = scalar_select %p483, %s28, 1
      %p485 = scmp.lt.s32.totalorder %s482, 1
      %s486 = scalar_select %p485, %s482, 1
      %s487 = smul.addr %s484, 2
      %s488 = sadd.s32 %s486, %s487
      %s489 = smul.addr %s488, 8
      %s490 = scalar_lea.vmem %s1, %s489
      %p491 = pneg %p87
      %p492 = pneg %p84
      %s493 = smul.u32 2, %s29
      %p494 = scmp.lt.s32.totalorder %s28, 1
      %s495 = scalar_select %p494, %s28, 1
      %p496 = scmp.lt.s32.totalorder %s493, 1
      %s497 = scalar_select %p496, %s493, 1
      %s498 = smul.addr %s495, 2
      %s499 = sadd.s32 %s497, %s498
      %s500 = smul.addr %s499, 8
      %s501 = scalar_lea.vmem %s2, %s500
      %p502 = pneg %p115
      %p503 = pneg %p112
      %s504 = smul.u32 2, %s29
      %p505 = scmp.lt.s32.totalorder %s28, 1
      %s506 = scalar_select %p505, %s28, 1
      %p507 = scmp.lt.s32.totalorder %s504, 1
      %s508 = scalar_select %p507, %s504, 1
      %s509 = smul.addr %s506, 2
      %s510 = sadd.s32 %s508, %s509
      %s511 = smul.addr %s510, 8
      %s512 = scalar_lea.vmem %s3, %s511
      %p513 = pneg %p143
      %p514 = pneg %p140
      %s515 = smul.u32 2, %s29
      %p516 = scmp.lt.s32.totalorder %s28, 1
      %s517 = scalar_select %p516, %s28, 1
      %p518 = scmp.lt.s32.totalorder %s515, 1
      %s519 = scalar_select %p518, %s515, 1
      %s520 = smul.addr %s517, 2
      %s521 = sadd.s32 %s519, %s520
      %s522 = scalar_lea.vmem %s4, %s521
      %p523 = pneg %p171
      %p524 = pneg %p168
      %p525 = pneg %p199
      %p526 = pneg %p196
      %s527 = smul.u32 2, %s29
      %p528 = scmp.lt.s32.totalorder %s28, 1
      %s529 = scalar_select %p528, %s28, 1
      %p530 = scmp.lt.s32.totalorder %s527, 1
      %s531 = scalar_select %p530, %s527, 1
      %s532 = smul.addr %s529, 2
      %s533 = sadd.s32 %s531, %s532
      %s534 = scalar_lea.vmem %s5, %s533
      %p535 = pneg %p225
      %p536 = pneg %p222
      %p537 = scmp.lt.s32.totalorder %s28, 1
      %s538 = scalar_select %p537, %s28, 1
      %s539 = scalar_lea.vmem %s6, %s538
      %p540 = pneg %p251
      %p541 = pneg %p248
      %p542 = scmp.lt.s32.totalorder %s28, 1
      %s543 = scalar_select %p542, %s28, 1
      %s544 = scalar_lea.vmem %s7, %s543
      %p545 = pneg %p277
      %p546 = pneg %p274
      %p547 = scmp.lt.s32.totalorder %s28, 1
      %s548 = scalar_select %p547, %s28, 1
      %s549 = scalar_lea.vmem %s8, %s548
      %p550 = pneg %p303
      %p551 = pneg %p300
      %p552 = scmp.lt.s32.totalorder %s28, 1
      %s553 = scalar_select %p552, %s28, 1
      %s554 = scalar_lea.vmem %s9, %s553
      %p555 = pneg %p329
      %p556 = pneg %p326
      %p557 = scmp.lt.s32.totalorder %s28, 1
      %s558 = scalar_select %p557, %s28, 1
      %s559 = scalar_lea.vmem %s10, %s558
      %p560 = pneg %p355
      %p561 = pneg %p352
      %p562 = scmp.lt.s32.totalorder %s28, 1
      %s563 = scalar_select %p562, %s28, 1
      %s564 = scalar_lea.vmem %s11, %s563
      %p565 = pneg %p381
      %p566 = pneg %p378
      %p567 = scmp.lt.s32.totalorder %s28, 1
      %s568 = scalar_select %p567, %s28, 1
      %s569 = scalar_lea.vmem %s12, %s568
      %s570 = smul.u32 2, %s29
      %p571 = scmp.lt.s32.totalorder %s28, 1
      %s572 = scalar_select %p571, %s28, 1
      %p573 = scmp.lt.s32.totalorder %s570, 1
      %s574 = scalar_select %p573, %s570, 1
      %s575 = smul.addr %s572, 2
      %s576 = sadd.s32 %s574, %s575
      %s577 = smul.addr %s576, 8
      %s578 = scalar_lea.vmem %s0, %s577
      %s579 = smul.u32 2, %s29
      %s580 = smul.u32 2, %s29
      %p581 = scmp.lt.s32.totalorder %s28, 1
      %s582 = scalar_select %p581, %s28, 1
      %p583 = scmp.lt.s32.totalorder %s580, 1
      %s584 = scalar_select %p583, %s580, 1
      %s585 = smul.addr %s582, 2
      %s586 = sadd.s32 %s584, %s585
      %s587 = smul.addr %s586, 8
      %s588 = scalar_lea.vmem %s1, %s587
      %s589 = smul.u32 2, %s29
      %s590 = smul.u32 2, %s29
      %p591 = scmp.lt.s32.totalorder %s28, 1
      %s592 = scalar_select %p591, %s28, 1
      %p593 = scmp.lt.s32.totalorder %s590, 1
      %s594 = scalar_select %p593, %s590, 1
      %s595 = smul.addr %s592, 2
      %s596 = sadd.s32 %s594, %s595
      %s597 = smul.addr %s596, 8
      %s598 = scalar_lea.vmem %s2, %s597
      %s599 = smul.u32 2, %s29
      %s600 = smul.u32 2, %s29
      %p601 = scmp.lt.s32.totalorder %s28, 1
      %s602 = scalar_select %p601, %s28, 1
      %p603 = scmp.lt.s32.totalorder %s600, 1
      %s604 = scalar_select %p603, %s600, 1
      %s605 = smul.addr %s602, 2
      %s606 = sadd.s32 %s604, %s605
      %s607 = smul.addr %s606, 8
      %s608 = scalar_lea.vmem %s3, %s607
      %s609 = smul.u32 2, %s29
      %s610 = smul.u32 2, %s29
      %p611 = scmp.lt.s32.totalorder %s28, 1
      %s612 = scalar_select %p611, %s28, 1
      %p613 = scmp.lt.s32.totalorder %s610, 1
      %s614 = scalar_select %p613, %s610, 1
      %s615 = smul.addr %s612, 2
      %s616 = sadd.s32 %s614, %s615
      %s617 = scalar_lea.vmem %s4, %s616
      %s618 = smul.u32 2, %s29
      %s619 = smul.u32 2, %s29
      %p620 = scmp.lt.s32.totalorder %s28, 1
      %s621 = scalar_select %p620, %s28, 1
      %p622 = scmp.lt.s32.totalorder %s619, 1
      %s623 = scalar_select %p622, %s619, 1
      %s624 = smul.addr %s621, 2
      %s625 = sadd.s32 %s623, %s624
      %s626 = scalar_lea.vmem %s5, %s625
      %s627 = smul.u32 2, %s29
      %p628 = scmp.lt.s32.totalorder %s28, 1
      %s629 = scalar_select %p628, %s28, 1
      %s630 = scalar_lea.vmem %s6, %s629
      %p631 = scmp.lt.s32.totalorder %s28, 1
      %s632 = scalar_select %p631, %s28, 1
      %s633 = scalar_lea.vmem %s7, %s632
      %p634 = scmp.lt.s32.totalorder %s28, 1
      %s635 = scalar_select %p634, %s28, 1
      %s636 = scalar_lea.vmem %s8, %s635
      %p637 = scmp.lt.s32.totalorder %s28, 1
      %s638 = scalar_select %p637, %s28, 1
      %s639 = scalar_lea.vmem %s9, %s638
      %p640 = scmp.lt.s32.totalorder %s28, 1
      %s641 = scalar_select %p640, %s28, 1
      %s642 = scalar_lea.vmem %s10, %s641
      %p643 = scmp.lt.s32.totalorder %s28, 1
      %s644 = scalar_select %p643, %s28, 1
      %s645 = scalar_lea.vmem %s11, %s644
      %p646 = scmp.lt.s32.totalorder %s28, 1
      %s647 = scalar_select %p646, %s28, 1
      %s648 = scalar_lea.vmem %s12, %s647
      %p649 = scmp.eq.s32.totalorder %s29, 0
      // Predicated region
      $region41: #{bisenetv2_loss.1} parent=39 // pred_check
        %p650 = pneg %p649
      $region42: #{bisenetv2_loss.1} parent=39 // pred_check_branch
        %652 = sbr.rel (%p650) target = $region44
      $region43: #{bisenetv2_loss.1} parent=39 // pred_region
        %vm653 = vcmask 0
        %654 = vst.msk [vmem:[%s630] sm:$0x1] %vm653, 0.0
        %655 = vst.msk [vmem:[%s633] sm:$0x1] %vm653, 0.0
        %656 = vst.msk [vmem:[%s636] sm:$0x1] %vm653, 0.0
        %657 = vst.msk [vmem:[%s639] sm:$0x1] %vm653, 0.0
        %658 = vst.msk [vmem:[%s642] sm:$0x1] %vm653, 0.0
        %659 = vst.msk [vmem:[%s645] sm:$0x1] %vm653, 0.0
        %660 = vst.msk [vmem:[%s648] sm:$0x1] %vm653, 0.0
      $region44: #{bisenetv2_loss.1} parent=39 // pred_fallthru
        _
      %v661 = vld [vmem:[%s617] sm:$0x3]
      %vm662 = vcmp.ne.s32.totalorder %v661, 255
      %v663 = vsel %vm662, 1, 0
      %v664 = vcvt.s32.f32 %v663
      %v665 = vld [vmem:[%s578] sm:$0xff]
      %v666 = vld [vmem:[%s578 + $0x8] sm:$0xff]
      %v667 = vrot.slane %v665, 4
      %v668 = vmax.f32 %v665, %v667
      %v669 = vrot.slane %v668, 2
      %v670 = vmax.f32 %v668, %v669
      %v671 = vrot.slane %v670, 1
      %v672 = vmax.f32 %v670, %v671
      %v673 = vrot.slane %v666, 4
      %v674 = vmax.f32 %v666, %v673
      %v675 = vrot.slane %v674, 2
      %v676 = vmax.f32 %v674, %v675
      %v677 = vrot.slane %v676, 1
      %v678 = vmax.f32 %v676, %v677
      %v679 = vsub.f32 %v665, %v672
      %v680 = vsub.f32 %v666, %v678
      %v681 = vmul.f32 %v679, 1.442695
      %v682 = vpow.pop %v681
      %v683 = vmul.f32 %v680, 1.442695
      %v684 = vpow.pop %v683
      %v685 = vrot.slane %v682, 4
      %v686 = vadd.f32 %v682, %v685
      %v687 = vrot.slane %v686, 2
      %v688 = vadd.f32 %v686, %v687
      %v689 = vrot.slane %v688, 1
      %v690 = vadd.f32 %v688, %v689
      %v691 = vrot.slane %v684, 4
      %v692 = vadd.f32 %v684, %v691
      %v693 = vrot.slane %v692, 2
      %v694 = vadd.f32 %v692, %v693
      %v695 = vrot.slane %v694, 1
      %v696 = vadd.f32 %v694, %v695
      %v697 = vlog2.pop %v690
      %v698 = vmul.f32 %v697, 0.6931472
      %v699 = vlog2.pop %v696
      %v700 = vmul.f32 %v699, 0.6931472
      %v701 = vadd.f32 %v672, %v698
      %v702 = vadd.f32 %v678, %v700
      %v703 = vlaneseq
      %v704 = vshrl.u32 %v703, 7
      %v705 = vlaneseq
      %v706 = vshrl.u32 %v705, 7
      %v707 = vsub.s32 0, %v706
      %v708 = vrot.slane %v661, %v707
      %v709 = vlaneseq
      %v710 = vshrl.u32 %v709, 7
      %v711 = vsub.s32 1, %v710
      %v712 = vrot.slane %v661, %v711
      %vm713 = vcmp.eq.s32.totalorder %v704, %v708
      %vm714 = vcmp.eq.s32.totalorder %v704, %v712
      %v715 = vsel %vm713, %v665, 0.0
      %v716 = vsel %vm714, %v666, 0.0
      %v717 = vrot.slane %v715, 4
      %v718 = vadd.f32 %v715, %v717
      %v719 = vrot.slane %v718, 2
      %v720 = vadd.f32 %v718, %v719
      %v721 = vrot.slane %v720, 1
      %v722 = vadd.f32 %v720, %v721
      %v723 = vrot.slane %v716, 4
      %v724 = vadd.f32 %v716, %v723
      %v725 = vrot.slane %v724, 2
      %v726 = vadd.f32 %v724, %v725
      %v727 = vrot.slane %v726, 1
      %v728 = vadd.f32 %v726, %v727
      %v729 = vsub.f32 %v701, %v722
      %v730 = vsub.f32 %v702, %v728
      %v733 = vcombine.low %v729, %v730
      %v735 = vunpack.c.l.s4 1966171168
      %v736 = vunpack.c.0.s8 %v735
      %v737 = vlaneseq
      %v738 = vshrl.u32 %v737, 7
      %v739 = vsub.s32 %v736, %v738
      %v740 = vrot.slane %v733, %v739
      %v742 = vunpack.c.l.s4 1966171168
      %v743 = vunpack.c.0.s8 %v742
      %v744 = vlaneseq
      %v745 = vshrl.u32 %v744, 7
      %v746 = vsub.s32 %v743, %v745
      %v747 = vrot.slane %v740, %v746
      %v749 = vsel %vm662, %v747, -1.0
      %v750 = vlaneseq
      %vm751 = vcmp.ge.s32.totalorder %v750, 0
      %vm752 = vcmp.lt.s32.totalorder %v750, 256
      %vm753 = vmand %vm751, %vm752
      %754 = vst.msk [vmem:[%s626] sm:$0x3] %vm753, %v749
      %vm755 = vcmp.gt.f32.partialorder %v729, 0.7
      %vm756 = vcmp.gt.f32.partialorder %v730, 0.7
      %v757 = vsel %vm755, 1, 0
      %v758 = vsel %vm756, 1, 0
      %v759 = vcombine.low %v757, %v758
      %v761 = vunpack.c.l.s4 1966171168
      %v762 = vunpack.c.0.s8 %v761
      %v763 = vlaneseq
      %v764 = vshrl.u32 %v763, 7
      %v765 = vsub.s32 %v762, %v764
      %v766 = vrot.slane %v759, %v765
      %v768 = vunpack.c.l.s4 1966171168
      %v769 = vunpack.c.0.s8 %v768
      %v770 = vlaneseq
      %v771 = vshrl.u32 %v770, 7
      %v772 = vsub.s32 %v769, %v771
      %v773 = vrot.slane %v766, %v772
      %vm774 = vcmp.ne.s32.totalorder %v773, 0
      %vm775 = vmand %vm662, %vm774
      %v776 = vld [vmem:[%s630] sm:$0x1]
      %v778 = vlaneseq
      %v779 = vshrl.u32 %v778, 7
      %v780 = vsub.s32 0, %v779
      %v781 = vrot.slane %v664, %v780
      %v782 = vlaneseq
      %v783 = vshrl.u32 %v782, 7
      %v784 = vsub.s32 1, %v783
      %v785 = vrot.slane %v664, %v784
      %vm788 = vcmask 1040384
      %v789 = vsel %vm788, %v781, 0.0
      %v790 = vsel %vm788, %v785, 0.0
      %v791 = vadd.f32 %v789, %v790
      %792 = vadd.xlane.f32.xlu0 %v791
      %v793 = vpop.xlane.xlu0 %792
      %v794 = vrot.slane %v793, 4
      %v795 = vadd.f32 %v793, %v794
      %v796 = vrot.slane %v795, 2
      %v797 = vadd.f32 %v795, %v796
      %v798 = vrot.slane %v797, 1
      %v799 = vadd.f32 %v797, %v798
      %s800 = vtos %v799
      %v801 = vstv %s800
      %v802 = vadd.f32 %v776, %v801
      %vm803 = vcmask 0
      %804 = vst.msk [vmem:[%s630] sm:$0x1] %vm803, %v802
      %v805 = vld [vmem:[%s633] sm:$0x1]
      %v806 = vsel %vm662, %v747, 0.0
      %v808 = vlaneseq
      %v809 = vshrl.u32 %v808, 7
      %v810 = vsub.s32 0, %v809
      %v811 = vrot.slane %v806, %v810
      %v812 = vlaneseq
      %v813 = vshrl.u32 %v812, 7
      %v814 = vsub.s32 1, %v813
      %v815 = vrot.slane %v806, %v814
      %v818 = vsel %vm788, %v811, 0.0
      %v819 = vsel %vm788, %v815, 0.0
      %v820 = vadd.f32 %v818, %v819
      %821 = vadd.xlane.f32.xlu0 %v820
      %v822 = vpop.xlane.xlu0 %821
      %v823 = vrot.slane %v822, 4
      %v824 = vadd.f32 %v822, %v823
      %v825 = vrot.slane %v824, 2
      %v826 = vadd.f32 %v824, %v825
      %v827 = vrot.slane %v826, 1
      %v828 = vadd.f32 %v826, %v827
      %s829 = vtos %v828
      %v830 = vstv %s829
      %v831 = vadd.f32 %v805, %v830
      %832 = vst.msk [vmem:[%s633] sm:$0x1] %vm803, %v831
      %v833 = vld [vmem:[%s636] sm:$0x1]
      %v834 = vsel %vm775, 1, 0
      %v835 = vcvt.s32.f32 %v834
      %v837 = vlaneseq
      %v838 = vshrl.u32 %v837, 7
      %v839 = vsub.s32 0, %v838
      %v840 = vrot.slane %v835, %v839
      %v841 = vlaneseq
      %v842 = vshrl.u32 %v841, 7
      %v843 = vsub.s32 1, %v842
      %v844 = vrot.slane %v835, %v843
      %v847 = vsel %vm788, %v840, 0.0
      %v848 = vsel %vm788, %v844, 0.0
      %v849 = vadd.f32 %v847, %v848
      %850 = vadd.xlane.f32.xlu0 %v849
      %v851 = vpop.xlane.xlu0 %850
      %v852 = vrot.slane %v851, 4
      %v853 = vadd.f32 %v851, %v852
      %v854 = vrot.slane %v853, 2
      %v855 = vadd.f32 %v853, %v854
      %v856 = vrot.slane %v855, 1
      %v857 = vadd.f32 %v855, %v856
      %s858 = vtos %v857
      %v859 = vstv %s858
      %v860 = vadd.f32 %v833, %v859
      %861 = vst.msk [vmem:[%s636] sm:$0x1] %vm803, %v860
      %v862 = vld [vmem:[%s639] sm:$0x1]
      %v863 = vsel %vm775, %v747, 0.0
      %v865 = vlaneseq
      %v866 = vshrl.u32 %v865, 7
      %v867 = vsub.s32 0, %v866
      %v868 = vrot.slane %v863, %v867
      %v869 = vlaneseq
      %v870 = vshrl.u32 %v869, 7
      %v871 = vsub.s32 1, %v870
      %v872 = vrot.slane %v863, %v871
      %v875 = vsel %vm788, %v868, 0.0
      %v876 = vsel %vm788, %v872, 0.0
      %v877 = vadd.f32 %v875, %v876
      %878 = vadd.xlane.f32.xlu0 %v877
      %v879 = vpop.xlane.xlu0 %878
      %v880 = vrot.slane %v879, 4
      %v881 = vadd.f32 %v879, %v880
      %v882 = vrot.slane %v881, 2
      %v883 = vadd.f32 %v881, %v882
      %v884 = vrot.slane %v883, 1
      %v885 = vadd.f32 %v883, %v884
      %s886 = vtos %v885
      %v887 = vstv %s886
      %v888 = vadd.f32 %v862, %v887
      %889 = vst.msk [vmem:[%s639] sm:$0x1] %vm803, %v888
      %v890 = vld [vmem:[%s588] sm:$0xff]
      %v891 = vld [vmem:[%s588 + $0x8] sm:$0xff]
      %v892 = vrot.slane %v890, 4
      %v893 = vmax.f32 %v890, %v892
      %v894 = vrot.slane %v893, 2
      %v895 = vmax.f32 %v893, %v894
      %v896 = vrot.slane %v895, 1
      %v897 = vmax.f32 %v895, %v896
      %v898 = vrot.slane %v891, 4
      %v899 = vmax.f32 %v891, %v898
      %v900 = vrot.slane %v899, 2
      %v901 = vmax.f32 %v899, %v900
      %v902 = vrot.slane %v901, 1
      %v903 = vmax.f32 %v901, %v902
      %v904 = vsub.f32 %v890, %v897
      %v905 = vsub.f32 %v891, %v903
      %v906 = vmul.f32 %v904, 1.442695
      %v907 = vpow.pop %v906
      %v908 = vmul.f32 %v905, 1.442695
      %v909 = vpow.pop %v908
      %v910 = vrot.slane %v907, 4
      %v911 = vadd.f32 %v907, %v910
      %v912 = vrot.slane %v911, 2
      %v913 = vadd.f32 %v911, %v912
      %v914 = vrot.slane %v913, 1
      %v915 = vadd.f32 %v913, %v914
      %v916 = vrot.slane %v909, 4
      %v917 = vadd.f32 %v909, %v916
      %v918 = vrot.slane %v917, 2
      %v919 = vadd.f32 %v917, %v918
      %v920 = vrot.slane %v919, 1
      %v921 = vadd.f32 %v919, %v920
      %v922 = vlog2.pop %v915
      %v923 = vmul.f32 %v922, 0.6931472
      %v924 = vlog2.pop %v921
      %v925 = vmul.f32 %v924, 0.6931472
      %v926 = vadd.f32 %v897, %v923
      %v927 = vadd.f32 %v903, %v925
      %v928 = vsel %vm713, %v890, 0.0
      %v929 = vsel %vm714, %v891, 0.0
      %v930 = vrot.slane %v928, 4
      %v931 = vadd.f32 %v928, %v930
      %v932 = vrot.slane %v931, 2
      %v933 = vadd.f32 %v931, %v932
      %v934 = vrot.slane %v933, 1
      %v935 = vadd.f32 %v933, %v934
      %v936 = vrot.slane %v929, 4
      %v937 = vadd.f32 %v929, %v936
      %v938 = vrot.slane %v937, 2
      %v939 = vadd.f32 %v937, %v938
      %v940 = vrot.slane %v939, 1
      %v941 = vadd.f32 %v939, %v940
      %v942 = vsub.f32 %v926, %v935
      %v943 = vsub.f32 %v927, %v941
      %v944 = vld [vmem:[%s642] sm:$0x1]
      %v947 = vcombine.low %v942, %v943
      %v949 = vunpack.c.l.s4 1966171168
      %v950 = vunpack.c.0.s8 %v949
      %v951 = vlaneseq
      %v952 = vshrl.u32 %v951, 7
      %v953 = vsub.s32 %v950, %v952
      %v954 = vrot.slane %v947, %v953
      %v956 = vunpack.c.l.s4 1966171168
      %v957 = vunpack.c.0.s8 %v956
      %v958 = vlaneseq
      %v959 = vshrl.u32 %v958, 7
      %v960 = vsub.s32 %v957, %v959
      %v961 = vrot.slane %v954, %v960
      %v963 = vsel %vm662, %v961, 0.0
      %v965 = vlaneseq
      %v966 = vshrl.u32 %v965, 7
      %v967 = vsub.s32 0, %v966
      %v968 = vrot.slane %v963, %v967
      %v969 = vlaneseq
      %v970 = vshrl.u32 %v969, 7
      %v971 = vsub.s32 1, %v970
      %v972 = vrot.slane %v963, %v971
      %v975 = vsel %vm788, %v968, 0.0
      %v976 = vsel %vm788, %v972, 0.0
      %v977 = vadd.f32 %v975, %v976
      %978 = vadd.xlane.f32.xlu0 %v977
      %v979 = vpop.xlane.xlu0 %978
      %v980 = vrot.slane %v979, 4
      %v981 = vadd.f32 %v979, %v980
      %v982 = vrot.slane %v981, 2
      %v983 = vadd.f32 %v981, %v982
      %v984 = vrot.slane %v983, 1
      %v985 = vadd.f32 %v983, %v984
      %s986 = vtos %v985
      %v987 = vstv %s986
      %v988 = vadd.f32 %v944, %v987
      %989 = vst.msk [vmem:[%s642] sm:$0x1] %vm803, %v988
      %v990 = vld [vmem:[%s598] sm:$0xff]
      %v991 = vld [vmem:[%s598 + $0x8] sm:$0xff]
      %v992 = vrot.slane %v990, 4
      %v993 = vmax.f32 %v990, %v992
      %v994 = vrot.slane %v993, 2
      %v995 = vmax.f32 %v993, %v994
      %v996 = vrot.slane %v995, 1
      %v997 = vmax.f32 %v995, %v996
      %v998 = vrot.slane %v991, 4
      %v999 = vmax.f32 %v991, %v998
      %v1000 = vrot.slane %v999, 2
      %v1001 = vmax.f32 %v999, %v1000
      %v1002 = vrot.slane %v1001, 1
      %v1003 = vmax.f32 %v1001, %v1002
      %v1004 = vsub.f32 %v990, %v997
      %v1005 = vsub.f32 %v991, %v1003
      %v1006 = vmul.f32 %v1004, 1.442695
      %v1007 = vpow.pop %v1006
      %v1008 = vmul.f32 %v1005, 1.442695
      %v1009 = vpow.pop %v1008
      %v1010 = vrot.slane %v1007, 4
      %v1011 = vadd.f32 %v1007, %v1010
      %v1012 = vrot.slane %v1011, 2
      %v1013 = vadd.f32 %v1011, %v1012
      %v1014 = vrot.slane %v1013, 1
      %v1015 = vadd.f32 %v1013, %v1014
      %v1016 = vrot.slane %v1009, 4
      %v1017 = vadd.f32 %v1009, %v1016
      %v1018 = vrot.slane %v1017, 2
      %v1019 = vadd.f32 %v1017, %v1018
      %v1020 = vrot.slane %v1019, 1
      %v1021 = vadd.f32 %v1019, %v1020
      %v1022 = vlog2.pop %v1015
      %v1023 = vmul.f32 %v1022, 0.6931472
      %v1024 = vlog2.pop %v1021
      %v1025 = vmul.f32 %v1024, 0.6931472
      %v1026 = vadd.f32 %v997, %v1023
      %v1027 = vadd.f32 %v1003, %v1025
      %v1028 = vsel %vm713, %v990, 0.0
      %v1029 = vsel %vm714, %v991, 0.0
      %v1030 = vrot.slane %v1028, 4
      %v1031 = vadd.f32 %v1028, %v1030
      %v1032 = vrot.slane %v1031, 2
      %v1033 = vadd.f32 %v1031, %v1032
      %v1034 = vrot.slane %v1033, 1
      %v1035 = vadd.f32 %v1033, %v1034
      %v1036 = vrot.slane %v1029, 4
      %v1037 = vadd.f32 %v1029, %v1036
      %v1038 = vrot.slane %v1037, 2
      %v1039 = vadd.f32 %v1037, %v1038
      %v1040 = vrot.slane %v1039, 1
      %v1041 = vadd.f32 %v1039, %v1040
      %v1042 = vsub.f32 %v1026, %v1035
      %v1043 = vsub.f32 %v1027, %v1041
      %v1044 = vld [vmem:[%s645] sm:$0x1]
      %v1047 = vcombine.low %v1042, %v1043
      %v1049 = vunpack.c.l.s4 1966171168
      %v1050 = vunpack.c.0.s8 %v1049
      %v1051 = vlaneseq
      %v1052 = vshrl.u32 %v1051, 7
      %v1053 = vsub.s32 %v1050, %v1052
      %v1054 = vrot.slane %v1047, %v1053
      %v1056 = vunpack.c.l.s4 1966171168
      %v1057 = vunpack.c.0.s8 %v1056
      %v1058 = vlaneseq
      %v1059 = vshrl.u32 %v1058, 7
      %v1060 = vsub.s32 %v1057, %v1059
      %v1061 = vrot.slane %v1054, %v1060
      %v1063 = vsel %vm662, %v1061, 0.0
      %v1065 = vlaneseq
      %v1066 = vshrl.u32 %v1065, 7
      %v1067 = vsub.s32 0, %v1066
      %v1068 = vrot.slane %v1063, %v1067
      %v1069 = vlaneseq
      %v1070 = vshrl.u32 %v1069, 7
      %v1071 = vsub.s32 1, %v1070
      %v1072 = vrot.slane %v1063, %v1071
      %v1075 = vsel %vm788, %v1068, 0.0
      %v1076 = vsel %vm788, %v1072, 0.0
      %v1077 = vadd.f32 %v1075, %v1076
      %1078 = vadd.xlane.f32.xlu0 %v1077
      %v1079 = vpop.xlane.xlu0 %1078
      %v1080 = vrot.slane %v1079, 4
      %v1081 = vadd.f32 %v1079, %v1080
      %v1082 = vrot.slane %v1081, 2
      %v1083 = vadd.f32 %v1081, %v1082
      %v1084 = vrot.slane %v1083, 1
      %v1085 = vadd.f32 %v1083, %v1084
      %s1086 = vtos %v1085
      %v1087 = vstv %s1086
      %v1088 = vadd.f32 %v1044, %v1087
      %1089 = vst.msk [vmem:[%s645] sm:$0x1] %vm803, %v1088
      %v1090 = vld [vmem:[%s608] sm:$0xff]
      %v1091 = vld [vmem:[%s608 + $0x8] sm:$0xff]
      %v1092 = vrot.slane %v1090, 4
      %v1093 = vmax.f32 %v1090, %v1092
      %v1094 = vrot.slane %v1093, 2
      %v1095 = vmax.f32 %v1093, %v1094
      %v1096 = vrot.slane %v1095, 1
      %v1097 = vmax.f32 %v1095, %v1096
      %v1098 = vrot.slane %v1091, 4
      %v1099 = vmax.f32 %v1091, %v1098
      %v1100 = vrot.slane %v1099, 2
      %v1101 = vmax.f32 %v1099, %v1100
      %v1102 = vrot.slane %v1101, 1
      %v1103 = vmax.f32 %v1101, %v1102
      %v1104 = vsub.f32 %v1090, %v1097
      %v1105 = vsub.f32 %v1091, %v1103
      %v1106 = vmul.f32 %v1104, 1.442695
      %v1107 = vpow.pop %v1106
      %v1108 = vmul.f32 %v1105, 1.442695
      %v1109 = vpow.pop %v1108
      %v1110 = vrot.slane %v1107, 4
      %v1111 = vadd.f32 %v1107, %v1110
      %v1112 = vrot.slane %v1111, 2
      %v1113 = vadd.f32 %v1111, %v1112
      %v1114 = vrot.slane %v1113, 1
      %v1115 = vadd.f32 %v1113, %v1114
      %v1116 = vrot.slane %v1109, 4
      %v1117 = vadd.f32 %v1109, %v1116
      %v1118 = vrot.slane %v1117, 2
      %v1119 = vadd.f32 %v1117, %v1118
      %v1120 = vrot.slane %v1119, 1
      %v1121 = vadd.f32 %v1119, %v1120
      %v1122 = vlog2.pop %v1115
      %v1123 = vmul.f32 %v1122, 0.6931472
      %v1124 = vlog2.pop %v1121
      %v1125 = vmul.f32 %v1124, 0.6931472
      %v1126 = vadd.f32 %v1097, %v1123
      %v1127 = vadd.f32 %v1103, %v1125
      %v1128 = vsel %vm713, %v1090, 0.0
      %v1129 = vsel %vm714, %v1091, 0.0
      %v1130 = vrot.slane %v1128, 4
      %v1131 = vadd.f32 %v1128, %v1130
      %v1132 = vrot.slane %v1131, 2
      %v1133 = vadd.f32 %v1131, %v1132
      %v1134 = vrot.slane %v1133, 1
      %v1135 = vadd.f32 %v1133, %v1134
      %v1136 = vrot.slane %v1129, 4
      %v1137 = vadd.f32 %v1129, %v1136
      %v1138 = vrot.slane %v1137, 2
      %v1139 = vadd.f32 %v1137, %v1138
      %v1140 = vrot.slane %v1139, 1
      %v1141 = vadd.f32 %v1139, %v1140
      %v1142 = vsub.f32 %v1126, %v1135
      %v1143 = vsub.f32 %v1127, %v1141
      %v1144 = vld [vmem:[%s648] sm:$0x1]
      %v1147 = vcombine.low %v1142, %v1143
      %v1149 = vunpack.c.l.s4 1966171168
      %v1150 = vunpack.c.0.s8 %v1149
      %v1151 = vlaneseq
      %v1152 = vshrl.u32 %v1151, 7
      %v1153 = vsub.s32 %v1150, %v1152
      %v1154 = vrot.slane %v1147, %v1153
      %v1156 = vunpack.c.l.s4 1966171168
      %v1157 = vunpack.c.0.s8 %v1156
      %v1158 = vlaneseq
      %v1159 = vshrl.u32 %v1158, 7
      %v1160 = vsub.s32 %v1157, %v1159
      %v1161 = vrot.slane %v1154, %v1160
      %v1163 = vsel %vm662, %v1161, 0.0
      %v1165 = vlaneseq
      %v1166 = vshrl.u32 %v1165, 7
      %v1167 = vsub.s32 0, %v1166
      %v1168 = vrot.slane %v1163, %v1167
      %v1169 = vlaneseq
      %v1170 = vshrl.u32 %v1169, 7
      %v1171 = vsub.s32 1, %v1170
      %v1172 = vrot.slane %v1163, %v1171
      %v1175 = vsel %vm788, %v1168, 0.0
      %v1176 = vsel %vm788, %v1172, 0.0
      %v1177 = vadd.f32 %v1175, %v1176
      %1178 = vadd.xlane.f32.xlu0 %v1177
      %v1179 = vpop.xlane.xlu0 %1178
      %v1180 = vrot.slane %v1179, 4
      %v1181 = vadd.f32 %v1179, %v1180
      %v1182 = vrot.slane %v1181, 2
      %v1183 = vadd.f32 %v1181, %v1182
      %v1184 = vrot.slane %v1183, 1
      %v1185 = vadd.f32 %v1183, %v1184
      %s1186 = vtos %v1185
      %v1187 = vstv %s1186
      %v1188 = vadd.f32 %v1144, %v1187
      %1189 = vst.msk [vmem:[%s648] sm:$0x1] %vm803, %v1188
      %s1190 = smul.u32 2, %s29
      %p1191 = scmp.lt.s32.totalorder %s28, 1
      %s1192 = scalar_select %p1191, %s28, 1
      %p1193 = scmp.lt.s32.totalorder %s1190, 1
      %s1194 = scalar_select %p1193, %s1190, 1
      %s1195 = smul.addr %s1192, 2
      %s1196 = sadd.s32 %s1194, %s1195
      %s1197 = scalar_lea.vmem %s5, %s1196
      %p1198 = scmp.lt.s32.totalorder %s28, 1
      %s1199 = scalar_select %p1198, %s28, 1
      %s1200 = scalar_lea.vmem %s6, %s1199
      %p1201 = scmp.lt.s32.totalorder %s28, 1
      %s1202 = scalar_select %p1201, %s28, 1
      %s1203 = scalar_lea.vmem %s7, %s1202
      %p1204 = scmp.lt.s32.totalorder %s28, 1
      %s1205 = scalar_select %p1204, %s28, 1
      %s1206 = scalar_lea.vmem %s8, %s1205
      %p1207 = scmp.lt.s32.totalorder %s28, 1
      %s1208 = scalar_select %p1207, %s28, 1
      %s1209 = scalar_lea.vmem %s9, %s1208
      %p1210 = scmp.lt.s32.totalorder %s28, 1
      %s1211 = scalar_select %p1210, %s28, 1
      %s1212 = scalar_lea.vmem %s10, %s1211
      %p1213 = scmp.lt.s32.totalorder %s28, 1
      %s1214 = scalar_select %p1213, %s28, 1
      %s1215 = scalar_lea.vmem %s11, %s1214
      %p1216 = scmp.lt.s32.totalorder %s28, 1
      %s1217 = scalar_select %p1216, %s28, 1
      %s1218 = scalar_lea.vmem %s12, %s1217
      // Predicated region
      $region45: #{bisenetv2_loss.1} parent=39 // pred_check
        %p1219 = pneg %p196
      $region46: #{bisenetv2_loss.1} parent=39 // pred_check_branch
        %1221 = sbr.rel (%p1219) target = $region48
      $region47: #{bisenetv2_loss.1} parent=39 // pred_region
        %s1222 = smul.u32 2, %s29
      $region48: #{bisenetv2_loss.1} parent=39 // pred_fallthru
        _
      // Predicated region
      $region49: #{bisenetv2_loss.1} parent=39 // pred_check
        %p1223 = pneg %p222
      $region50: #{bisenetv2_loss.1} parent=39 // pred_check_branch
        %1225 = sbr.rel (%p1223) target = $region52
      $region51: #{bisenetv2_loss.1} parent=39 // pred_region
        _
      $region52: #{bisenetv2_loss.1} parent=39 // pred_fallthru
        _
      // Predicated region
      $region53: #{bisenetv2_loss.1} parent=39 // pred_check
        %p1226 = pneg %p248
      $region54: #{bisenetv2_loss.1} parent=39 // pred_check_branch
        %1228 = sbr.rel (%p1226) target = $region56
      $region55: #{bisenetv2_loss.1} parent=39 // pred_region
        _
      $region56: #{bisenetv2_loss.1} parent=39 // pred_fallthru
        _
      // Predicated region
      $region57: #{bisenetv2_loss.1} parent=39 // pred_check
        %p1229 = pneg %p274
      $region58: #{bisenetv2_loss.1} parent=39 // pred_check_branch
        %1231 = sbr.rel (%p1229) target = $region60
      $region59: #{bisenetv2_loss.1} parent=39 // pred_region
        _
      $region60: #{bisenetv2_loss.1} parent=39 // pred_fallthru
        _
      // Predicated region
      $region61: #{bisenetv2_loss.1} parent=39 // pred_check
        %p1232 = pneg %p300
      $region62: #{bisenetv2_loss.1} parent=39 // pred_check_branch
        %1234 = sbr.rel (%p1232) target = $region64
      $region63: #{bisenetv2_loss.1} parent=39 // pred_region
        _
      $region64: #{bisenetv2_loss.1} parent=39 // pred_fallthru
        _
      // Predicated region
      $region65: #{bisenetv2_loss.1} parent=39 // pred_check
        %p1235 = pneg %p326
      $region66: #{bisenetv2_loss.1} parent=39 // pred_check_branch
        %1237 = sbr.rel (%p1235) target = $region68
      $region67: #{bisenetv2_loss.1} parent=39 // pred_region
        _
      $region68: #{bisenetv2_loss.1} parent=39 // pred_fallthru
        _
      // Predicated region
      $region69: #{bisenetv2_loss.1} parent=39 // pred_check
        %p1238 = pneg %p352
      $region70: #{bisenetv2_loss.1} parent=39 // pred_check_branch
        %1240 = sbr.rel (%p1238) target = $region72
      $region71: #{bisenetv2_loss.1} parent=39 // pred_region
        _
      $region72: #{bisenetv2_loss.1} parent=39 // pred_fallthru
        _
      // Predicated region
      $region73: #{bisenetv2_loss.1} parent=39 // pred_check
        %p1241 = pneg %p378
      $region74: #{bisenetv2_loss.1} parent=39 // pred_check_branch
        %1243 = sbr.rel (%p1241) target = $region76
      $region75: #{bisenetv2_loss.1} parent=39 // pred_region
        _
      $region76: #{bisenetv2_loss.1} parent=39 // pred_fallthru
        _
    $region40: #{bisenetv2_loss.1} parent=5 // pred_fallthru
      _
    %p1244 = scmp.le.s32.totalorder 2, %s19
    // Predicated region
    $region77: #{bisenetv2_loss.1} parent=5 // pred_check
      %p1245 = pneg %p1244
    $region78: #{bisenetv2_loss.1} parent=5 // pred_check_branch
      %1247 = sbr.rel (%p1245) target = $region80
    $region79: #{bisenetv2_loss.1} parent=5 // pred_region
      %s1248 = ssub.s32 %s19, 2
      // Predicated region
      $region81: #{bisenetv2_loss.1} parent=79 // pred_check
        %p1249 = pneg %p202
      $region82: #{bisenetv2_loss.1} parent=79 // pred_check_branch
        %1251 = sbr.rel (%p1249) target = $region84
      $region83: #{bisenetv2_loss.1} parent=79 // pred_region
        %s1252 = smul.u32 2, %s31
        %p1253 = scmp.lt.s32.totalorder %s30, 1
        %s1254 = scalar_select %p1253, %s30, 1
        %p1255 = scmp.lt.s32.totalorder %s1252, 1
        %s1256 = scalar_select %p1255, %s1252, 1
        %s1257 = smul.addr %s1254, 2
        %s1258 = sadd.s32 %s1256, %s1257
        %s1259 = scalar_lea.vmem %s5, %s1258
      $region84: #{bisenetv2_loss.1} parent=79 // pred_fallthru
        _
      // Predicated region
      $region85: #{bisenetv2_loss.1} parent=79 // pred_check
        %p1260 = pneg %p228
      $region86: #{bisenetv2_loss.1} parent=79 // pred_check_branch
        %1262 = sbr.rel (%p1260) target = $region88
      $region87: #{bisenetv2_loss.1} parent=79 // pred_region
        %p1263 = scmp.lt.s32.totalorder %s30, 1
        %s1264 = scalar_select %p1263, %s30, 1
        %s1265 = scalar_lea.vmem %s6, %s1264
      $region88: #{bisenetv2_loss.1} parent=79 // pred_fallthru
        _
      // Predicated region
      $region89: #{bisenetv2_loss.1} parent=79 // pred_check
        %p1266 = pneg %p254
      $region90: #{bisenetv2_loss.1} parent=79 // pred_check_branch
        %1268 = sbr.rel (%p1266) target = $region92
      $region91: #{bisenetv2_loss.1} parent=79 // pred_region
        %p1269 = scmp.lt.s32.totalorder %s30, 1
        %s1270 = scalar_select %p1269, %s30, 1
        %s1271 = scalar_lea.vmem %s7, %s1270
      $region92: #{bisenetv2_loss.1} parent=79 // pred_fallthru
        _
      // Predicated region
      $region93: #{bisenetv2_loss.1} parent=79 // pred_check
        %p1272 = pneg %p280
      $region94: #{bisenetv2_loss.1} parent=79 // pred_check_branch
        %1274 = sbr.rel (%p1272) target = $region96
      $region95: #{bisenetv2_loss.1} parent=79 // pred_region
        %p1275 = scmp.lt.s32.totalorder %s30, 1
        %s1276 = scalar_select %p1275, %s30, 1
        %s1277 = scalar_lea.vmem %s8, %s1276
      $region96: #{bisenetv2_loss.1} parent=79 // pred_fallthru
        _
      // Predicated region
      $region97: #{bisenetv2_loss.1} parent=79 // pred_check
        %p1278 = pneg %p306
      $region98: #{bisenetv2_loss.1} parent=79 // pred_check_branch
        %1280 = sbr.rel (%p1278) target = $region100
      $region99: #{bisenetv2_loss.1} parent=79 // pred_region
        %p1281 = scmp.lt.s32.totalorder %s30, 1
        %s1282 = scalar_select %p1281, %s30, 1
        %s1283 = scalar_lea.vmem %s9, %s1282
      $region100: #{bisenetv2_loss.1} parent=79 // pred_fallthru
        _
      // Predicated region
      $region101: #{bisenetv2_loss.1} parent=79 // pred_check
        %p1284 = pneg %p332
      $region102: #{bisenetv2_loss.1} parent=79 // pred_check_branch
        %1286 = sbr.rel (%p1284) target = $region104
      $region103: #{bisenetv2_loss.1} parent=79 // pred_region
        %p1287 = scmp.lt.s32.totalorder %s30, 1
        %s1288 = scalar_select %p1287, %s30, 1
        %s1289 = scalar_lea.vmem %s10, %s1288
      $region104: #{bisenetv2_loss.1} parent=79 // pred_fallthru
        _
      // Predicated region
      $region105: #{bisenetv2_loss.1} parent=79 // pred_check
        %p1290 = pneg %p358
      $region106: #{bisenetv2_loss.1} parent=79 // pred_check_branch
        %1292 = sbr.rel (%p1290) target = $region108
      $region107: #{bisenetv2_loss.1} parent=79 // pred_region
        %p1293 = scmp.lt.s32.totalorder %s30, 1
        %s1294 = scalar_select %p1293, %s30, 1
        %s1295 = scalar_lea.vmem %s11, %s1294
      $region108: #{bisenetv2_loss.1} parent=79 // pred_fallthru
        _
      // Predicated region
      $region109: #{bisenetv2_loss.1} parent=79 // pred_check
        %p1296 = pneg %p384
      $region110: #{bisenetv2_loss.1} parent=79 // pred_check_branch
        %1298 = sbr.rel (%p1296) target = $region112
      $region111: #{bisenetv2_loss.1} parent=79 // pred_region
        %p1299 = scmp.lt.s32.totalorder %s30, 1
        %s1300 = scalar_select %p1299, %s30, 1
        %s1301 = scalar_lea.vmem %s12, %s1300
      $region112: #{bisenetv2_loss.1} parent=79 // pred_fallthru
        _
    $region80: #{bisenetv2_loss.1} parent=5 // pred_fallthru
      _
  $region6: #{bisenetv2_loss.1} parent=0 // loop_footer
    %s23 = sadd.s32 1, %s19
  $region7: #{bisenetv2_loss.1} parent=0 // loop_footer_branch
    %18 = sbr.rel target = $region3
  $region8: #{bisenetv2_loss.1} parent=0 // loop_exit
    _

</llo_original>
